<compile_context>
chip_gen: v6e
topology: v6e:2x2x1
jax: 0.10.0
libtpu: 0.0.40
codegen_flags: <defaults>
</compile_context>

<pallas_src>
import functools

import jax
import jax.numpy as jnp
from jax.experimental import pallas as pl
from jax.experimental.pallas import tpu as pltpu


def _widescope_fused_kernel(x_ref, w1_ref, w2_ref, w3_ref, g_ref, bta_ref,
                            yy_ref, xx_ref, o_ref, *, H, W):
    """Fused conv(d=1)->BN->ReLU -> conv(d=2)->BN->ReLU -> conv(d=3)->BN->ReLU.

    x_ref   : (Cin, L)     bf16, L = N*H*W, channel-major flattened input
    w*_ref  : (F, 9*Cin_i) bf16, columns ordered (kh, kw, cin)  [tap-major]
    g_ref   : (F, 3)       f32, BN gammas (column i = stage i)
    bta_ref : (F, 3)       f32, BN betas
    yy_ref  : (1, L)       int32, spatial row index of each flat position
    xx_ref  : (1, L)       int32, spatial col index of each flat position
    o_ref   : (F, L)       f32, lane-dense output
    """
    L = o_ref.shape[-1]
    yy = yy_ref[...]
    xx = xx_ref[...]

    def stage(act, w_bf16, col, dilation):
        # im2col via lane rolls + 'same'-padding masks, then ONE K=9*C matmul.
        slabs = []
        for kh in range(3):
            for kw in range(3):
                dh = (kh - 1) * dilation          # row offset of this tap
                dw = (kw - 1) * dilation          # col offset of this tap
                shift = (-(dh * W + dw)) % L      # slab[f] = act[f + dh*W + dw]
                tap = act if shift == 0 else pltpu.roll(act, shift, axis=1)
                valid = ((yy >= -dh) & (yy < H - dh) &
                         (xx >= -dw) & (xx < W - dw))
                slabs.append(jnp.where(valid, tap, 0.0))
        xcol = jnp.concatenate(slabs, axis=0).astype(jnp.bfloat16)   # (9C, L)
        conv = jnp.dot(w_bf16, xcol,
                       preferred_element_type=jnp.float32)           # (F, L)

        # BatchNorm2d in training mode (batch stats, biased variance,
        # eps=1e-5), one-pass statistics.  Conv bias omitted: a per-channel
        # constant is exactly removed by the mean subtraction.
        inv_l = 1.0 / L
        mean = jnp.sum(conv, axis=1, keepdims=True) * inv_l
        ex2 = jnp.sum(conv * conv, axis=1, keepdims=True) * inv_l
        var = jnp.maximum(ex2 - mean * mean, 0.0)
        scale = g_ref[:, col:col + 1] * jax.lax.rsqrt(var + 1e-5)
        offset = bta_ref[:, col:col + 1] - mean * scale
        return jnp.maximum(conv * scale + offset, 0.0)                # ReLU

    act = stage(x_ref[...].astype(jnp.float32), w1_ref[...], 0, dilation=1)
    act = stage(act, w2_ref[...], 1, dilation=2)
    act = stage(act, w3_ref[...], 2, dilation=3)
    o_ref[...] = act


def widescope_conv2d_block(x_nchw, params):
    """Forward pass matching WidescopeConv2DBlock.forward (NCHW in / NCHW out)."""
    N, Cin, H, W = x_nchw.shape
    F = params[0][0].shape[-1]
    L = N * H * W

    # Lane-dense, bf16 input (halves HBM traffic; MXU-native dtype).
    x_cl = jnp.transpose(x_nchw, (1, 0, 2, 3)).reshape(Cin, L).astype(jnp.bfloat16)

    def pack_w(w):  # (3, 3, cin, F) -> (F, 9*cin) bf16, cols ordered (kh, kw, cin)
        cout = w.shape[-1]
        return jnp.transpose(w, (3, 0, 1, 2)).reshape(cout, -1).astype(jnp.bfloat16)

    (w1, _, g1, b1), (w2, _, g2, b2), (w3, _, g3, b3) = params
    gammas = jnp.stack([g1, g2, g3], axis=1).astype(jnp.float32)      # (F, 3)
    betas = jnp.stack([b1, b2, b3], axis=1).astype(jnp.float32)       # (F, 3)

    # Spatial coordinates per flattened position (computed outside the kernel
    # so the kernel only needs vector compares, no vector int div/mod).
    yy = jnp.broadcast_to(
        jnp.arange(H, dtype=jnp.int32)[None, :, None], (N, H, W)).reshape(1, L)
    xx = jnp.broadcast_to(
        jnp.arange(W, dtype=jnp.int32)[None, None, :], (N, H, W)).reshape(1, L)

    kernel = functools.partial(_widescope_fused_kernel, H=H, W=W)

    def full_spec(shape):
        nd = len(shape)
        return pl.BlockSpec(shape, lambda: (0,) * nd)

    operands = (x_cl, pack_w(w1), pack_w(w2), pack_w(w3), gammas, betas, yy, xx)
    out = pl.pallas_call(
        kernel,
        out_shape=jax.ShapeDtypeStruct((F, L), jnp.float32),
        in_specs=[full_spec(op.shape) for op in operands],
        out_specs=full_spec((F, L)),
        compiler_params=pltpu.CompilerParams(
            vmem_limit_bytes=32 * 1024 * 1024),
    )(*operands)

    return jnp.transpose(out.reshape(F, N, H, W), (1, 0, 2, 3))       # -> NCHW


def init_params(key, in_chans, filters):
    """Deterministic synthetic parameters for the three conv+BN stages."""
    params = []
    cin = in_chans
    for _ in range(3):
        k1, k2, k3, k4, key = jax.random.split(key, 5)
        fan_in = cin * 3 * 3
        bound = (6.0 / fan_in) ** 0.5                                 # he_uniform
        w = jax.random.uniform(k1, (3, 3, cin, filters), jnp.float32, -bound, bound)
        bb = 1.0 / (fan_in ** 0.5)
        b = jax.random.uniform(k2, (filters,), jnp.float32, -bb, bb)  # conv bias
        gamma = jax.random.uniform(k3, (filters,), jnp.float32, 0.5, 1.5)
        beta = jax.random.uniform(k4, (filters,), jnp.float32, -0.5, 0.5)
        params.append((w, b, gamma, beta))
        cin = filters
    return params


def reference_forward(x_nchw, params):
    """Pure-JAX reference replicating the PyTorch module (includes conv bias)."""
    y = x_nchw
    for i, (w, b, g, be) in enumerate(params):
        d = i + 1
        w_oihw = jnp.transpose(w, (3, 2, 0, 1))
        y = jax.lax.conv_general_dilated(
            y, w_oihw, window_strides=(1, 1), padding=((d, d), (d, d)),
            rhs_dilation=(d, d), dimension_numbers=("NCHW", "OIHW", "NCHW"))
        y = y + b[None, :, None, None]
        mean = jnp.mean(y, axis=(0, 2, 3), keepdims=True)
        var = jnp.mean(jnp.square(y - mean), axis=(0, 2, 3), keepdims=True)
        y = (y - mean) * (g[None, :, None, None] * jax.lax.rsqrt(var + 1e-5))
        y = y + be[None, :, None, None]
        y = jnp.maximum(y, 0.0)
    return y


if __name__ == "__main__":
    key = jax.random.PRNGKey(0)
    kx, kp = jax.random.split(key)

    in_chans, filters = 4, 8
    N, H, W = 2, 16, 16
    x = jax.random.normal(kx, (N, in_chans, H, W), jnp.float32)       # NCHW
    params = init_params(kp, in_chans, filters)

    fwd = jax.jit(widescope_conv2d_block)
    out = jax.block_until_ready(fwd(x, params))

    assert out.shape == (N, filters, H, W), out.shape
    assert bool(jnp.all(jnp.isfinite(out)))
    assert bool(jnp.all(out >= 0.0))                                   # ReLU

    # Loose tolerance: the kernel feeds the MXU bf16 operands (f32 accumulate)
    # over three chained stages; the reference is full precision.
    ref = reference_forward(x, params)
    max_err = float(jnp.max(jnp.abs(out - ref)))
    assert bool(jnp.allclose(out, ref, atol=0.2, rtol=0.2)), max_err

    print("KERNEL_OK")
</pallas_src>

<mosaic_0001>
module attributes {stable_mosaic.version = 11 : i64} {
  func.func @_widescope_fused_kernel(%arg0: memref<4x512xbf16, #tpu.memory_space<vmem>>, %arg1: memref<8x36xbf16, #tpu.memory_space<vmem>>, %arg2: memref<8x72xbf16, #tpu.memory_space<vmem>>, %arg3: memref<8x72xbf16, #tpu.memory_space<vmem>>, %arg4: memref<8x3xf32, #tpu.memory_space<vmem>>, %arg5: memref<8x3xf32, #tpu.memory_space<vmem>>, %arg6: memref<1x512xi32, #tpu.memory_space<vmem>>, %arg7: memref<1x512xi32, #tpu.memory_space<vmem>>, %arg8: memref<8x512xf32, #tpu.memory_space<vmem>>) attributes {dimension_semantics = [], scalar_prefetch = 0 : i64, scratch_operands = 0 : i64, tpu.core_type = #tpu.core_type<tc>} {
    %c0 = arith.constant 0 : index
    %c0_0 = arith.constant 0 : index
    %0 = vector.load %arg6[%c0, %c0_0] : memref<1x512xi32, #tpu.memory_space<vmem>>, vector<1x512xi32>
    %c0_1 = arith.constant 0 : index
    %c0_2 = arith.constant 0 : index
    %1 = vector.load %arg7[%c0_1, %c0_2] : memref<1x512xi32, #tpu.memory_space<vmem>>, vector<1x512xi32>
    %c0_3 = arith.constant 0 : index
    %c0_4 = arith.constant 0 : index
    %2 = vector.load %arg0[%c0_3, %c0_4] : memref<4x512xbf16, #tpu.memory_space<vmem>>, vector<4x512xbf16>
    %3 = arith.extf %2 : vector<4x512xbf16> to vector<4x512xf32>
    %c0_5 = arith.constant 0 : index
    %c0_6 = arith.constant 0 : index
    %4 = vector.load %arg1[%c0_5, %c0_6] : memref<8x36xbf16, #tpu.memory_space<vmem>>, vector<8x36xbf16>
    %c17_i32 = arith.constant 17 : i32
    %5 = tpu.dynamic_rotate %3 by %c17_i32 dim 1 : vector<4x512xf32>, i32 -> vector<4x512xf32>
    %c1_i32 = arith.constant 1 : i32
    %6 = vector.broadcast %c1_i32 : i32 to vector<1x512xi32>
    %7 = arith.cmpi sge, %0, %6 : vector<1x512xi32>
    %c17_i32_7 = arith.constant 17 : i32
    %8 = vector.broadcast %c17_i32_7 : i32 to vector<1x512xi32>
    %9 = arith.cmpi slt, %0, %8 : vector<1x512xi32>
    %10 = arith.andi %7, %9 : vector<1x512xi1>
    %c1_i32_8 = arith.constant 1 : i32
    %11 = vector.broadcast %c1_i32_8 : i32 to vector<1x512xi32>
    %12 = arith.cmpi sge, %1, %11 : vector<1x512xi32>
    %13 = arith.andi %10, %12 : vector<1x512xi1>
    %c17_i32_9 = arith.constant 17 : i32
    %14 = vector.broadcast %c17_i32_9 : i32 to vector<1x512xi32>
    %15 = arith.cmpi slt, %1, %14 : vector<1x512xi32>
    %16 = arith.andi %13, %15 : vector<1x512xi1>
    %cst = arith.constant 0.000000e+00 : f32
    %17 = vector.shape_cast %16 : vector<1x512xi1> to vector<1x512xi1>
    %18 = vector.broadcast %17 : vector<1x512xi1> to vector<4x512xi1>
    %19 = vector.broadcast %cst : f32 to vector<4x512xf32>
    %20 = arith.select %18, %5, %19 : vector<4x512xi1>, vector<4x512xf32>
    %c16_i32 = arith.constant 16 : i32
    %21 = tpu.dynamic_rotate %3 by %c16_i32 dim 1 : vector<4x512xf32>, i32 -> vector<4x512xf32>
    %c1_i32_10 = arith.constant 1 : i32
    %22 = vector.broadcast %c1_i32_10 : i32 to vector<1x512xi32>
    %23 = arith.cmpi sge, %0, %22 : vector<1x512xi32>
    %c17_i32_11 = arith.constant 17 : i32
    %24 = vector.broadcast %c17_i32_11 : i32 to vector<1x512xi32>
    %25 = arith.cmpi slt, %0, %24 : vector<1x512xi32>
    %26 = arith.andi %23, %25 : vector<1x512xi1>
    %c0_i32 = arith.constant 0 : i32
    %27 = vector.broadcast %c0_i32 : i32 to vector<1x512xi32>
    %28 = arith.cmpi sge, %1, %27 : vector<1x512xi32>
    %29 = arith.andi %26, %28 : vector<1x512xi1>
    %c16_i32_12 = arith.constant 16 : i32
    %30 = vector.broadcast %c16_i32_12 : i32 to vector<1x512xi32>
    %31 = arith.cmpi slt, %1, %30 : vector<1x512xi32>
    %32 = arith.andi %29, %31 : vector<1x512xi1>
    %cst_13 = arith.constant 0.000000e+00 : f32
    %33 = vector.shape_cast %32 : vector<1x512xi1> to vector<1x512xi1>
    %34 = vector.broadcast %33 : vector<1x512xi1> to vector<4x512xi1>
    %35 = vector.broadcast %cst_13 : f32 to vector<4x512xf32>
    %36 = arith.select %34, %21, %35 : vector<4x512xi1>, vector<4x512xf32>
    %c15_i32 = arith.constant 15 : i32
    %37 = tpu.dynamic_rotate %3 by %c15_i32 dim 1 : vector<4x512xf32>, i32 -> vector<4x512xf32>
    %c1_i32_14 = arith.constant 1 : i32
    %38 = vector.broadcast %c1_i32_14 : i32 to vector<1x512xi32>
    %39 = arith.cmpi sge, %0, %38 : vector<1x512xi32>
    %c17_i32_15 = arith.constant 17 : i32
    %40 = vector.broadcast %c17_i32_15 : i32 to vector<1x512xi32>
    %41 = arith.cmpi slt, %0, %40 : vector<1x512xi32>
    %42 = arith.andi %39, %41 : vector<1x512xi1>
    %c-1_i32 = arith.constant -1 : i32
    %43 = vector.broadcast %c-1_i32 : i32 to vector<1x512xi32>
    %44 = arith.cmpi sge, %1, %43 : vector<1x512xi32>
    %45 = arith.andi %42, %44 : vector<1x512xi1>
    %c15_i32_16 = arith.constant 15 : i32
    %46 = vector.broadcast %c15_i32_16 : i32 to vector<1x512xi32>
    %47 = arith.cmpi slt, %1, %46 : vector<1x512xi32>
    %48 = arith.andi %45, %47 : vector<1x512xi1>
    %cst_17 = arith.constant 0.000000e+00 : f32
    %49 = vector.shape_cast %48 : vector<1x512xi1> to vector<1x512xi1>
    %50 = vector.broadcast %49 : vector<1x512xi1> to vector<4x512xi1>
    %51 = vector.broadcast %cst_17 : f32 to vector<4x512xf32>
    %52 = arith.select %50, %37, %51 : vector<4x512xi1>, vector<4x512xf32>
    %c1_i32_18 = arith.constant 1 : i32
    %53 = tpu.dynamic_rotate %3 by %c1_i32_18 dim 1 : vector<4x512xf32>, i32 -> vector<4x512xf32>
    %c0_i32_19 = arith.constant 0 : i32
    %54 = vector.broadcast %c0_i32_19 : i32 to vector<1x512xi32>
    %55 = arith.cmpi sge, %0, %54 : vector<1x512xi32>
    %c16_i32_20 = arith.constant 16 : i32
    %56 = vector.broadcast %c16_i32_20 : i32 to vector<1x512xi32>
    %57 = arith.cmpi slt, %0, %56 : vector<1x512xi32>
    %58 = arith.andi %55, %57 : vector<1x512xi1>
    %c1_i32_21 = arith.constant 1 : i32
    %59 = vector.broadcast %c1_i32_21 : i32 to vector<1x512xi32>
    %60 = arith.cmpi sge, %1, %59 : vector<1x512xi32>
    %61 = arith.andi %58, %60 : vector<1x512xi1>
    %c17_i32_22 = arith.constant 17 : i32
    %62 = vector.broadcast %c17_i32_22 : i32 to vector<1x512xi32>
    %63 = arith.cmpi slt, %1, %62 : vector<1x512xi32>
    %64 = arith.andi %61, %63 : vector<1x512xi1>
    %cst_23 = arith.constant 0.000000e+00 : f32
    %65 = vector.shape_cast %64 : vector<1x512xi1> to vector<1x512xi1>
    %66 = vector.broadcast %65 : vector<1x512xi1> to vector<4x512xi1>
    %67 = vector.broadcast %cst_23 : f32 to vector<4x512xf32>
    %68 = arith.select %66, %53, %67 : vector<4x512xi1>, vector<4x512xf32>
    %c0_i32_24 = arith.constant 0 : i32
    %69 = vector.broadcast %c0_i32_24 : i32 to vector<1x512xi32>
    %70 = arith.cmpi sge, %0, %69 : vector<1x512xi32>
    %c16_i32_25 = arith.constant 16 : i32
    %71 = vector.broadcast %c16_i32_25 : i32 to vector<1x512xi32>
    %72 = arith.cmpi slt, %0, %71 : vector<1x512xi32>
    %73 = arith.andi %70, %72 : vector<1x512xi1>
    %c0_i32_26 = arith.constant 0 : i32
    %74 = vector.broadcast %c0_i32_26 : i32 to vector<1x512xi32>
    %75 = arith.cmpi sge, %1, %74 : vector<1x512xi32>
    %76 = arith.andi %73, %75 : vector<1x512xi1>
    %c16_i32_27 = arith.constant 16 : i32
    %77 = vector.broadcast %c16_i32_27 : i32 to vector<1x512xi32>
    %78 = arith.cmpi slt, %1, %77 : vector<1x512xi32>
    %79 = arith.andi %76, %78 : vector<1x512xi1>
    %cst_28 = arith.constant 0.000000e+00 : f32
    %80 = vector.shape_cast %79 : vector<1x512xi1> to vector<1x512xi1>
    %81 = vector.broadcast %80 : vector<1x512xi1> to vector<4x512xi1>
    %82 = vector.broadcast %cst_28 : f32 to vector<4x512xf32>
    %83 = arith.select %81, %3, %82 : vector<4x512xi1>, vector<4x512xf32>
    %c511_i32 = arith.constant 511 : i32
    %84 = tpu.dynamic_rotate %3 by %c511_i32 dim 1 : vector<4x512xf32>, i32 -> vector<4x512xf32>
    %c0_i32_29 = arith.constant 0 : i32
    %85 = vector.broadcast %c0_i32_29 : i32 to vector<1x512xi32>
    %86 = arith.cmpi sge, %0, %85 : vector<1x512xi32>
    %c16_i32_30 = arith.constant 16 : i32
    %87 = vector.broadcast %c16_i32_30 : i32 to vector<1x512xi32>
    %88 = arith.cmpi slt, %0, %87 : vector<1x512xi32>
    %89 = arith.andi %86, %88 : vector<1x512xi1>
    %c-1_i32_31 = arith.constant -1 : i32
    %90 = vector.broadcast %c-1_i32_31 : i32 to vector<1x512xi32>
    %91 = arith.cmpi sge, %1, %90 : vector<1x512xi32>
    %92 = arith.andi %89, %91 : vector<1x512xi1>
    %c15_i32_32 = arith.constant 15 : i32
    %93 = vector.broadcast %c15_i32_32 : i32 to vector<1x512xi32>
    %94 = arith.cmpi slt, %1, %93 : vector<1x512xi32>
    %95 = arith.andi %92, %94 : vector<1x512xi1>
    %cst_33 = arith.constant 0.000000e+00 : f32
    %96 = vector.shape_cast %95 : vector<1x512xi1> to vector<1x512xi1>
    %97 = vector.broadcast %96 : vector<1x512xi1> to vector<4x512xi1>
    %98 = vector.broadcast %cst_33 : f32 to vector<4x512xf32>
    %99 = arith.select %97, %84, %98 : vector<4x512xi1>, vector<4x512xf32>
    %c497_i32 = arith.constant 497 : i32
    %100 = tpu.dynamic_rotate %3 by %c497_i32 dim 1 : vector<4x512xf32>, i32 -> vector<4x512xf32>
    %c-1_i32_34 = arith.constant -1 : i32
    %101 = vector.broadcast %c-1_i32_34 : i32 to vector<1x512xi32>
    %102 = arith.cmpi sge, %0, %101 : vector<1x512xi32>
    %c15_i32_35 = arith.constant 15 : i32
    %103 = vector.broadcast %c15_i32_35 : i32 to vector<1x512xi32>
    %104 = arith.cmpi slt, %0, %103 : vector<1x512xi32>
    %105 = arith.andi %102, %104 : vector<1x512xi1>
    %c1_i32_36 = arith.constant 1 : i32
    %106 = vector.broadcast %c1_i32_36 : i32 to vector<1x512xi32>
    %107 = arith.cmpi sge, %1, %106 : vector<1x512xi32>
    %108 = arith.andi %105, %107 : vector<1x512xi1>
    %c17_i32_37 = arith.constant 17 : i32
    %109 = vector.broadcast %c17_i32_37 : i32 to vector<1x512xi32>
    %110 = arith.cmpi slt, %1, %109 : vector<1x512xi32>
    %111 = arith.andi %108, %110 : vector<1x512xi1>
    %cst_38 = arith.constant 0.000000e+00 : f32
    %112 = vector.shape_cast %111 : vector<1x512xi1> to vector<1x512xi1>
    %113 = vector.broadcast %112 : vector<1x512xi1> to vector<4x512xi1>
    %114 = vector.broadcast %cst_38 : f32 to vector<4x512xf32>
    %115 = arith.select %113, %100, %114 : vector<4x512xi1>, vector<4x512xf32>
    %c496_i32 = arith.constant 496 : i32
    %116 = tpu.dynamic_rotate %3 by %c496_i32 dim 1 : vector<4x512xf32>, i32 -> vector<4x512xf32>
    %c-1_i32_39 = arith.constant -1 : i32
    %117 = vector.broadcast %c-1_i32_39 : i32 to vector<1x512xi32>
    %118 = arith.cmpi sge, %0, %117 : vector<1x512xi32>
    %c15_i32_40 = arith.constant 15 : i32
    %119 = vector.broadcast %c15_i32_40 : i32 to vector<1x512xi32>
    %120 = arith.cmpi slt, %0, %119 : vector<1x512xi32>
    %121 = arith.andi %118, %120 : vector<1x512xi1>
    %c0_i32_41 = arith.constant 0 : i32
    %122 = vector.broadcast %c0_i32_41 : i32 to vector<1x512xi32>
    %123 = arith.cmpi sge, %1, %122 : vector<1x512xi32>
    %124 = arith.andi %121, %123 : vector<1x512xi1>
    %c16_i32_42 = arith.constant 16 : i32
    %125 = vector.broadcast %c16_i32_42 : i32 to vector<1x512xi32>
    %126 = arith.cmpi slt, %1, %125 : vector<1x512xi32>
    %127 = arith.andi %124, %126 : vector<1x512xi1>
    %cst_43 = arith.constant 0.000000e+00 : f32
    %128 = vector.shape_cast %127 : vector<1x512xi1> to vector<1x512xi1>
    %129 = vector.broadcast %128 : vector<1x512xi1> to vector<4x512xi1>
    %130 = vector.broadcast %cst_43 : f32 to vector<4x512xf32>
    %131 = arith.select %129, %116, %130 : vector<4x512xi1>, vector<4x512xf32>
    %c495_i32 = arith.constant 495 : i32
    %132 = tpu.dynamic_rotate %3 by %c495_i32 dim 1 : vector<4x512xf32>, i32 -> vector<4x512xf32>
    %c-1_i32_44 = arith.constant -1 : i32
    %133 = vector.broadcast %c-1_i32_44 : i32 to vector<1x512xi32>
    %134 = arith.cmpi sge, %0, %133 : vector<1x512xi32>
    %c15_i32_45 = arith.constant 15 : i32
    %135 = vector.broadcast %c15_i32_45 : i32 to vector<1x512xi32>
    %136 = arith.cmpi slt, %0, %135 : vector<1x512xi32>
    %137 = arith.andi %134, %136 : vector<1x512xi1>
    %c-1_i32_46 = arith.constant -1 : i32
    %138 = vector.broadcast %c-1_i32_46 : i32 to vector<1x512xi32>
    %139 = arith.cmpi sge, %1, %138 : vector<1x512xi32>
    %140 = arith.andi %137, %139 : vector<1x512xi1>
    %c15_i32_47 = arith.constant 15 : i32
    %141 = vector.broadcast %c15_i32_47 : i32 to vector<1x512xi32>
    %142 = arith.cmpi slt, %1, %141 : vector<1x512xi32>
    %143 = arith.andi %140, %142 : vector<1x512xi1>
    %cst_48 = arith.constant 0.000000e+00 : f32
    %144 = vector.shape_cast %143 : vector<1x512xi1> to vector<1x512xi1>
    %145 = vector.broadcast %144 : vector<1x512xi1> to vector<4x512xi1>
    %146 = vector.broadcast %cst_48 : f32 to vector<4x512xf32>
    %147 = arith.select %145, %132, %146 : vector<4x512xi1>, vector<4x512xf32>
    %148 = tpu.concatenate %20, %36, %52, %68, %83, %99, %115, %131, %147 in 0 : vector<4x512xf32>, vector<4x512xf32>, vector<4x512xf32>, vector<4x512xf32>, vector<4x512xf32>, vector<4x512xf32>, vector<4x512xf32>, vector<4x512xf32>, vector<4x512xf32> -> vector<36x512xf32>
    %149 = arith.truncf %148 : vector<36x512xf32> to vector<36x512xbf16>
    %cst_49 = arith.constant dense<0.000000e+00> : vector<8x512xf32>
    %150 = tpu.matmul %4, %149, %cst_49 {dimension_numbers = #tpu.dot_dimension_numbers<[1], [0], [0], [1], [0, 0, 1, 1], [], []>} : vector<8x36xbf16>, vector<36x512xbf16>, vector<8x512xf32> -> vector<8x512xf32>
    %cst_50 = arith.constant dense<0.000000e+00> : vector<8xf32>
    %151 = vector.multi_reduction <add>, %150, %cst_50 [1] : vector<8x512xf32> to vector<8xf32>
    %152 = vector.shape_cast %151 : vector<8xf32> to vector<8x1xf32>
    %cst_51 = arith.constant 0.001953125 : f32
    %153 = vector.broadcast %cst_51 : f32 to vector<8x1xf32>
    %154 = arith.mulf %152, %153 : vector<8x1xf32>
    %155 = arith.mulf %150, %150 : vector<8x512xf32>
    %cst_52 = arith.constant dense<0.000000e+00> : vector<8xf32>
    %156 = vector.multi_reduction <add>, %155, %cst_52 [1] : vector<8x512xf32> to vector<8xf32>
    %157 = vector.shape_cast %156 : vector<8xf32> to vector<8x1xf32>
    %cst_53 = arith.constant 0.001953125 : f32
    %158 = vector.broadcast %cst_53 : f32 to vector<8x1xf32>
    %159 = arith.mulf %157, %158 : vector<8x1xf32>
    %160 = arith.mulf %154, %154 : vector<8x1xf32>
    %161 = arith.subf %159, %160 : vector<8x1xf32>
    %cst_54 = arith.constant 0.000000e+00 : f32
    %162 = vector.broadcast %cst_54 : f32 to vector<8x1xf32>
    %163 = arith.maximumf %161, %162 : vector<8x1xf32>
    %c0_55 = arith.constant 0 : index
    %c0_56 = arith.constant 0 : index
    %164 = vector.load %arg4[%c0_55, %c0_56] : memref<8x3xf32, #tpu.memory_space<vmem>>, vector<8x1xf32>
    %cst_57 = arith.constant 9.99999974E-6 : f32
    %165 = vector.broadcast %cst_57 : f32 to vector<8x1xf32>
    %166 = arith.addf %163, %165 : vector<8x1xf32>
    %167 = math.rsqrt %166 : vector<8x1xf32>
    %168 = arith.mulf %164, %167 : vector<8x1xf32>
    %c0_58 = arith.constant 0 : index
    %c0_59 = arith.constant 0 : index
    %169 = vector.load %arg5[%c0_58, %c0_59] : memref<8x3xf32, #tpu.memory_space<vmem>>, vector<8x1xf32>
    %170 = arith.mulf %154, %168 : vector<8x1xf32>
    %171 = arith.subf %169, %170 : vector<8x1xf32>
    %172 = vector.broadcast %168 : vector<8x1xf32> to vector<8x512xf32>
    %173 = arith.mulf %150, %172 : vector<8x512xf32>
    %174 = vector.broadcast %171 : vector<8x1xf32> to vector<8x512xf32>
    %175 = arith.addf %173, %174 : vector<8x512xf32>
    %cst_60 = arith.constant 0.000000e+00 : f32
    %176 = vector.broadcast %cst_60 : f32 to vector<8x512xf32>
    %177 = arith.maximumf %175, %176 : vector<8x512xf32>
    %c0_61 = arith.constant 0 : index
    %c0_62 = arith.constant 0 : index
    %178 = vector.load %arg2[%c0_61, %c0_62] : memref<8x72xbf16, #tpu.memory_space<vmem>>, vector<8x72xbf16>
    %c34_i32 = arith.constant 34 : i32
    %179 = tpu.dynamic_rotate %177 by %c34_i32 dim 1 : vector<8x512xf32>, i32 -> vector<8x512xf32>
    %c2_i32 = arith.constant 2 : i32
    %180 = vector.broadcast %c2_i32 : i32 to vector<1x512xi32>
    %181 = arith.cmpi sge, %0, %180 : vector<1x512xi32>
    %c18_i32 = arith.constant 18 : i32
    %182 = vector.broadcast %c18_i32 : i32 to vector<1x512xi32>
    %183 = arith.cmpi slt, %0, %182 : vector<1x512xi32>
    %184 = arith.andi %181, %183 : vector<1x512xi1>
    %c2_i32_63 = arith.constant 2 : i32
    %185 = vector.broadcast %c2_i32_63 : i32 to vector<1x512xi32>
    %186 = arith.cmpi sge, %1, %185 : vector<1x512xi32>
    %187 = arith.andi %184, %186 : vector<1x512xi1>
    %c18_i32_64 = arith.constant 18 : i32
    %188 = vector.broadcast %c18_i32_64 : i32 to vector<1x512xi32>
    %189 = arith.cmpi slt, %1, %188 : vector<1x512xi32>
    %190 = arith.andi %187, %189 : vector<1x512xi1>
    %cst_65 = arith.constant 0.000000e+00 : f32
    %191 = vector.shape_cast %190 : vector<1x512xi1> to vector<1x512xi1>
    %192 = vector.broadcast %191 : vector<1x512xi1> to vector<8x512xi1>
    %193 = vector.broadcast %cst_65 : f32 to vector<8x512xf32>
    %194 = arith.select %192, %179, %193 : vector<8x512xi1>, vector<8x512xf32>
    %c32_i32 = arith.constant 32 : i32
    %195 = tpu.dynamic_rotate %177 by %c32_i32 dim 1 : vector<8x512xf32>, i32 -> vector<8x512xf32>
    %c2_i32_66 = arith.constant 2 : i32
    %196 = vector.broadcast %c2_i32_66 : i32 to vector<1x512xi32>
    %197 = arith.cmpi sge, %0, %196 : vector<1x512xi32>
    %c18_i32_67 = arith.constant 18 : i32
    %198 = vector.broadcast %c18_i32_67 : i32 to vector<1x512xi32>
    %199 = arith.cmpi slt, %0, %198 : vector<1x512xi32>
    %200 = arith.andi %197, %199 : vector<1x512xi1>
    %c0_i32_68 = arith.constant 0 : i32
    %201 = vector.broadcast %c0_i32_68 : i32 to vector<1x512xi32>
    %202 = arith.cmpi sge, %1, %201 : vector<1x512xi32>
    %203 = arith.andi %200, %202 : vector<1x512xi1>
    %c16_i32_69 = arith.constant 16 : i32
    %204 = vector.broadcast %c16_i32_69 : i32 to vector<1x512xi32>
    %205 = arith.cmpi slt, %1, %204 : vector<1x512xi32>
    %206 = arith.andi %203, %205 : vector<1x512xi1>
    %cst_70 = arith.constant 0.000000e+00 : f32
    %207 = vector.shape_cast %206 : vector<1x512xi1> to vector<1x512xi1>
    %208 = vector.broadcast %207 : vector<1x512xi1> to vector<8x512xi1>
    %209 = vector.broadcast %cst_70 : f32 to vector<8x512xf32>
    %210 = arith.select %208, %195, %209 : vector<8x512xi1>, vector<8x512xf32>
    %c30_i32 = arith.constant 30 : i32
    %211 = tpu.dynamic_rotate %177 by %c30_i32 dim 1 : vector<8x512xf32>, i32 -> vector<8x512xf32>
    %c2_i32_71 = arith.constant 2 : i32
    %212 = vector.broadcast %c2_i32_71 : i32 to vector<1x512xi32>
    %213 = arith.cmpi sge, %0, %212 : vector<1x512xi32>
    %c18_i32_72 = arith.constant 18 : i32
    %214 = vector.broadcast %c18_i32_72 : i32 to vector<1x512xi32>
    %215 = arith.cmpi slt, %0, %214 : vector<1x512xi32>
    %216 = arith.andi %213, %215 : vector<1x512xi1>
    %c-2_i32 = arith.constant -2 : i32
    %217 = vector.broadcast %c-2_i32 : i32 to vector<1x512xi32>
    %218 = arith.cmpi sge, %1, %217 : vector<1x512xi32>
    %219 = arith.andi %216, %218 : vector<1x512xi1>
    %c14_i32 = arith.constant 14 : i32
    %220 = vector.broadcast %c14_i32 : i32 to vector<1x512xi32>
    %221 = arith.cmpi slt, %1, %220 : vector<1x512xi32>
    %222 = arith.andi %219, %221 : vector<1x512xi1>
    %cst_73 = arith.constant 0.000000e+00 : f32
    %223 = vector.shape_cast %222 : vector<1x512xi1> to vector<1x512xi1>
    %224 = vector.broadcast %223 : vector<1x512xi1> to vector<8x512xi1>
    %225 = vector.broadcast %cst_73 : f32 to vector<8x512xf32>
    %226 = arith.select %224, %211, %225 : vector<8x512xi1>, vector<8x512xf32>
    %c2_i32_74 = arith.constant 2 : i32
    %227 = tpu.dynamic_rotate %177 by %c2_i32_74 dim 1 : vector<8x512xf32>, i32 -> vector<8x512xf32>
    %c0_i32_75 = arith.constant 0 : i32
    %228 = vector.broadcast %c0_i32_75 : i32 to vector<1x512xi32>
    %229 = arith.cmpi sge, %0, %228 : vector<1x512xi32>
    %c16_i32_76 = arith.constant 16 : i32
    %230 = vector.broadcast %c16_i32_76 : i32 to vector<1x512xi32>
    %231 = arith.cmpi slt, %0, %230 : vector<1x512xi32>
    %232 = arith.andi %229, %231 : vector<1x512xi1>
    %c2_i32_77 = arith.constant 2 : i32
    %233 = vector.broadcast %c2_i32_77 : i32 to vector<1x512xi32>
    %234 = arith.cmpi sge, %1, %233 : vector<1x512xi32>
    %235 = arith.andi %232, %234 : vector<1x512xi1>
    %c18_i32_78 = arith.constant 18 : i32
    %236 = vector.broadcast %c18_i32_78 : i32 to vector<1x512xi32>
    %237 = arith.cmpi slt, %1, %236 : vector<1x512xi32>
    %238 = arith.andi %235, %237 : vector<1x512xi1>
    %cst_79 = arith.constant 0.000000e+00 : f32
    %239 = vector.shape_cast %238 : vector<1x512xi1> to vector<1x512xi1>
    %240 = vector.broadcast %239 : vector<1x512xi1> to vector<8x512xi1>
    %241 = vector.broadcast %cst_79 : f32 to vector<8x512xf32>
    %242 = arith.select %240, %227, %241 : vector<8x512xi1>, vector<8x512xf32>
    %c0_i32_80 = arith.constant 0 : i32
    %243 = vector.broadcast %c0_i32_80 : i32 to vector<1x512xi32>
    %244 = arith.cmpi sge, %0, %243 : vector<1x512xi32>
    %c16_i32_81 = arith.constant 16 : i32
    %245 = vector.broadcast %c16_i32_81 : i32 to vector<1x512xi32>
    %246 = arith.cmpi slt, %0, %245 : vector<1x512xi32>
    %247 = arith.andi %244, %246 : vector<1x512xi1>
    %c0_i32_82 = arith.constant 0 : i32
    %248 = vector.broadcast %c0_i32_82 : i32 to vector<1x512xi32>
    %249 = arith.cmpi sge, %1, %248 : vector<1x512xi32>
    %250 = arith.andi %247, %249 : vector<1x512xi1>
    %c16_i32_83 = arith.constant 16 : i32
    %251 = vector.broadcast %c16_i32_83 : i32 to vector<1x512xi32>
    %252 = arith.cmpi slt, %1, %251 : vector<1x512xi32>
    %253 = arith.andi %250, %252 : vector<1x512xi1>
    %cst_84 = arith.constant 0.000000e+00 : f32
    %254 = vector.shape_cast %253 : vector<1x512xi1> to vector<1x512xi1>
    %255 = vector.broadcast %254 : vector<1x512xi1> to vector<8x512xi1>
    %256 = vector.broadcast %cst_84 : f32 to vector<8x512xf32>
    %257 = arith.select %255, %177, %256 : vector<8x512xi1>, vector<8x512xf32>
    %c510_i32 = arith.constant 510 : i32
    %258 = tpu.dynamic_rotate %177 by %c510_i32 dim 1 : vector<8x512xf32>, i32 -> vector<8x512xf32>
    %c0_i32_85 = arith.constant 0 : i32
    %259 = vector.broadcast %c0_i32_85 : i32 to vector<1x512xi32>
    %260 = arith.cmpi sge, %0, %259 : vector<1x512xi32>
    %c16_i32_86 = arith.constant 16 : i32
    %261 = vector.broadcast %c16_i32_86 : i32 to vector<1x512xi32>
    %262 = arith.cmpi slt, %0, %261 : vector<1x512xi32>
    %263 = arith.andi %260, %262 : vector<1x512xi1>
    %c-2_i32_87 = arith.constant -2 : i32
    %264 = vector.broadcast %c-2_i32_87 : i32 to vector<1x512xi32>
    %265 = arith.cmpi sge, %1, %264 : vector<1x512xi32>
    %266 = arith.andi %263, %265 : vector<1x512xi1>
    %c14_i32_88 = arith.constant 14 : i32
    %267 = vector.broadcast %c14_i32_88 : i32 to vector<1x512xi32>
    %268 = arith.cmpi slt, %1, %267 : vector<1x512xi32>
    %269 = arith.andi %266, %268 : vector<1x512xi1>
    %cst_89 = arith.constant 0.000000e+00 : f32
    %270 = vector.shape_cast %269 : vector<1x512xi1> to vector<1x512xi1>
    %271 = vector.broadcast %270 : vector<1x512xi1> to vector<8x512xi1>
    %272 = vector.broadcast %cst_89 : f32 to vector<8x512xf32>
    %273 = arith.select %271, %258, %272 : vector<8x512xi1>, vector<8x512xf32>
    %c482_i32 = arith.constant 482 : i32
    %274 = tpu.dynamic_rotate %177 by %c482_i32 dim 1 : vector<8x512xf32>, i32 -> vector<8x512xf32>
    %c-2_i32_90 = arith.constant -2 : i32
    %275 = vector.broadcast %c-2_i32_90 : i32 to vector<1x512xi32>
    %276 = arith.cmpi sge, %0, %275 : vector<1x512xi32>
    %c14_i32_91 = arith.constant 14 : i32
    %277 = vector.broadcast %c14_i32_91 : i32 to vector<1x512xi32>
    %278 = arith.cmpi slt, %0, %277 : vector<1x512xi32>
    %279 = arith.andi %276, %278 : vector<1x512xi1>
    %c2_i32_92 = arith.constant 2 : i32
    %280 = vector.broadcast %c2_i32_92 : i32 to vector<1x512xi32>
    %281 = arith.cmpi sge, %1, %280 : vector<1x512xi32>
    %282 = arith.andi %279, %281 : vector<1x512xi1>
    %c18_i32_93 = arith.constant 18 : i32
    %283 = vector.broadcast %c18_i32_93 : i32 to vector<1x512xi32>
    %284 = arith.cmpi slt, %1, %283 : vector<1x512xi32>
    %285 = arith.andi %282, %284 : vector<1x512xi1>
    %cst_94 = arith.constant 0.000000e+00 : f32
    %286 = vector.shape_cast %285 : vector<1x512xi1> to vector<1x512xi1>
    %287 = vector.broadcast %286 : vector<1x512xi1> to vector<8x512xi1>
    %288 = vector.broadcast %cst_94 : f32 to vector<8x512xf32>
    %289 = arith.select %287, %274, %288 : vector<8x512xi1>, vector<8x512xf32>
    %c480_i32 = arith.constant 480 : i32
    %290 = tpu.dynamic_rotate %177 by %c480_i32 dim 1 : vector<8x512xf32>, i32 -> vector<8x512xf32>
    %c-2_i32_95 = arith.constant -2 : i32
    %291 = vector.broadcast %c-2_i32_95 : i32 to vector<1x512xi32>
    %292 = arith.cmpi sge, %0, %291 : vector<1x512xi32>
    %c14_i32_96 = arith.constant 14 : i32
    %293 = vector.broadcast %c14_i32_96 : i32 to vector<1x512xi32>
    %294 = arith.cmpi slt, %0, %293 : vector<1x512xi32>
    %295 = arith.andi %292, %294 : vector<1x512xi1>
    %c0_i32_97 = arith.constant 0 : i32
    %296 = vector.broadcast %c0_i32_97 : i32 to vector<1x512xi32>
    %297 = arith.cmpi sge, %1, %296 : vector<1x512xi32>
    %298 = arith.andi %295, %297 : vector<1x512xi1>
    %c16_i32_98 = arith.constant 16 : i32
    %299 = vector.broadcast %c16_i32_98 : i32 to vector<1x512xi32>
    %300 = arith.cmpi slt, %1, %299 : vector<1x512xi32>
    %301 = arith.andi %298, %300 : vector<1x512xi1>
    %cst_99 = arith.constant 0.000000e+00 : f32
    %302 = vector.shape_cast %301 : vector<1x512xi1> to vector<1x512xi1>
    %303 = vector.broadcast %302 : vector<1x512xi1> to vector<8x512xi1>
    %304 = vector.broadcast %cst_99 : f32 to vector<8x512xf32>
    %305 = arith.select %303, %290, %304 : vector<8x512xi1>, vector<8x512xf32>
    %c478_i32 = arith.constant 478 : i32
    %306 = tpu.dynamic_rotate %177 by %c478_i32 dim 1 : vector<8x512xf32>, i32 -> vector<8x512xf32>
    %c-2_i32_100 = arith.constant -2 : i32
    %307 = vector.broadcast %c-2_i32_100 : i32 to vector<1x512xi32>
    %308 = arith.cmpi sge, %0, %307 : vector<1x512xi32>
    %c14_i32_101 = arith.constant 14 : i32
    %309 = vector.broadcast %c14_i32_101 : i32 to vector<1x512xi32>
    %310 = arith.cmpi slt, %0, %309 : vector<1x512xi32>
    %311 = arith.andi %308, %310 : vector<1x512xi1>
    %c-2_i32_102 = arith.constant -2 : i32
    %312 = vector.broadcast %c-2_i32_102 : i32 to vector<1x512xi32>
    %313 = arith.cmpi sge, %1, %312 : vector<1x512xi32>
    %314 = arith.andi %311, %313 : vector<1x512xi1>
    %c14_i32_103 = arith.constant 14 : i32
    %315 = vector.broadcast %c14_i32_103 : i32 to vector<1x512xi32>
    %316 = arith.cmpi slt, %1, %315 : vector<1x512xi32>
    %317 = arith.andi %314, %316 : vector<1x512xi1>
    %cst_104 = arith.constant 0.000000e+00 : f32
    %318 = vector.shape_cast %317 : vector<1x512xi1> to vector<1x512xi1>
    %319 = vector.broadcast %318 : vector<1x512xi1> to vector<8x512xi1>
    %320 = vector.broadcast %cst_104 : f32 to vector<8x512xf32>
    %321 = arith.select %319, %306, %320 : vector<8x512xi1>, vector<8x512xf32>
    %322 = tpu.concatenate %194, %210, %226, %242, %257, %273, %289, %305, %321 in 0 : vector<8x512xf32>, vector<8x512xf32>, vector<8x512xf32>, vector<8x512xf32>, vector<8x512xf32>, vector<8x512xf32>, vector<8x512xf32>, vector<8x512xf32>, vector<8x512xf32> -> vector<72x512xf32>
    %323 = arith.truncf %322 : vector<72x512xf32> to vector<72x512xbf16>
    %cst_105 = arith.constant dense<0.000000e+00> : vector<8x512xf32>
    %324 = tpu.matmul %178, %323, %cst_105 {dimension_numbers = #tpu.dot_dimension_numbers<[1], [0], [0], [1], [0, 0, 1, 1], [], []>} : vector<8x72xbf16>, vector<72x512xbf16>, vector<8x512xf32> -> vector<8x512xf32>
    %cst_106 = arith.constant dense<0.000000e+00> : vector<8xf32>
    %325 = vector.multi_reduction <add>, %324, %cst_106 [1] : vector<8x512xf32> to vector<8xf32>
    %326 = vector.shape_cast %325 : vector<8xf32> to vector<8x1xf32>
    %cst_107 = arith.constant 0.001953125 : f32
    %327 = vector.broadcast %cst_107 : f32 to vector<8x1xf32>
    %328 = arith.mulf %326, %327 : vector<8x1xf32>
    %329 = arith.mulf %324, %324 : vector<8x512xf32>
    %cst_108 = arith.constant dense<0.000000e+00> : vector<8xf32>
    %330 = vector.multi_reduction <add>, %329, %cst_108 [1] : vector<8x512xf32> to vector<8xf32>
    %331 = vector.shape_cast %330 : vector<8xf32> to vector<8x1xf32>
    %cst_109 = arith.constant 0.001953125 : f32
    %332 = vector.broadcast %cst_109 : f32 to vector<8x1xf32>
    %333 = arith.mulf %331, %332 : vector<8x1xf32>
    %334 = arith.mulf %328, %328 : vector<8x1xf32>
    %335 = arith.subf %333, %334 : vector<8x1xf32>
    %cst_110 = arith.constant 0.000000e+00 : f32
    %336 = vector.broadcast %cst_110 : f32 to vector<8x1xf32>
    %337 = arith.maximumf %335, %336 : vector<8x1xf32>
    %c0_111 = arith.constant 0 : index
    %c1 = arith.constant 1 : index
    %338 = vector.load %arg4[%c0_111, %c1] : memref<8x3xf32, #tpu.memory_space<vmem>>, vector<8x1xf32>
    %cst_112 = arith.constant 9.99999974E-6 : f32
    %339 = vector.broadcast %cst_112 : f32 to vector<8x1xf32>
    %340 = arith.addf %337, %339 : vector<8x1xf32>
    %341 = math.rsqrt %340 : vector<8x1xf32>
    %342 = arith.mulf %338, %341 : vector<8x1xf32>
    %c0_113 = arith.constant 0 : index
    %c1_114 = arith.constant 1 : index
    %343 = vector.load %arg5[%c0_113, %c1_114] : memref<8x3xf32, #tpu.memory_space<vmem>>, vector<8x1xf32>
    %344 = arith.mulf %328, %342 : vector<8x1xf32>
    %345 = arith.subf %343, %344 : vector<8x1xf32>
    %346 = vector.broadcast %342 : vector<8x1xf32> to vector<8x512xf32>
    %347 = arith.mulf %324, %346 : vector<8x512xf32>
    %348 = vector.broadcast %345 : vector<8x1xf32> to vector<8x512xf32>
    %349 = arith.addf %347, %348 : vector<8x512xf32>
    %cst_115 = arith.constant 0.000000e+00 : f32
    %350 = vector.broadcast %cst_115 : f32 to vector<8x512xf32>
    %351 = arith.maximumf %349, %350 : vector<8x512xf32>
    %c0_116 = arith.constant 0 : index
    %c0_117 = arith.constant 0 : index
    %352 = vector.load %arg3[%c0_116, %c0_117] : memref<8x72xbf16, #tpu.memory_space<vmem>>, vector<8x72xbf16>
    %c51_i32 = arith.constant 51 : i32
    %353 = tpu.dynamic_rotate %351 by %c51_i32 dim 1 : vector<8x512xf32>, i32 -> vector<8x512xf32>
    %c3_i32 = arith.constant 3 : i32
    %354 = vector.broadcast %c3_i32 : i32 to vector<1x512xi32>
    %355 = arith.cmpi sge, %0, %354 : vector<1x512xi32>
    %c19_i32 = arith.constant 19 : i32
    %356 = vector.broadcast %c19_i32 : i32 to vector<1x512xi32>
    %357 = arith.cmpi slt, %0, %356 : vector<1x512xi32>
    %358 = arith.andi %355, %357 : vector<1x512xi1>
    %c3_i32_118 = arith.constant 3 : i32
    %359 = vector.broadcast %c3_i32_118 : i32 to vector<1x512xi32>
    %360 = arith.cmpi sge, %1, %359 : vector<1x512xi32>
    %361 = arith.andi %358, %360 : vector<1x512xi1>
    %c19_i32_119 = arith.constant 19 : i32
    %362 = vector.broadcast %c19_i32_119 : i32 to vector<1x512xi32>
    %363 = arith.cmpi slt, %1, %362 : vector<1x512xi32>
    %364 = arith.andi %361, %363 : vector<1x512xi1>
    %cst_120 = arith.constant 0.000000e+00 : f32
    %365 = vector.shape_cast %364 : vector<1x512xi1> to vector<1x512xi1>
    %366 = vector.broadcast %365 : vector<1x512xi1> to vector<8x512xi1>
    %367 = vector.broadcast %cst_120 : f32 to vector<8x512xf32>
    %368 = arith.select %366, %353, %367 : vector<8x512xi1>, vector<8x512xf32>
    %c48_i32 = arith.constant 48 : i32
    %369 = tpu.dynamic_rotate %351 by %c48_i32 dim 1 : vector<8x512xf32>, i32 -> vector<8x512xf32>
    %c3_i32_121 = arith.constant 3 : i32
    %370 = vector.broadcast %c3_i32_121 : i32 to vector<1x512xi32>
    %371 = arith.cmpi sge, %0, %370 : vector<1x512xi32>
    %c19_i32_122 = arith.constant 19 : i32
    %372 = vector.broadcast %c19_i32_122 : i32 to vector<1x512xi32>
    %373 = arith.cmpi slt, %0, %372 : vector<1x512xi32>
    %374 = arith.andi %371, %373 : vector<1x512xi1>
    %c0_i32_123 = arith.constant 0 : i32
    %375 = vector.broadcast %c0_i32_123 : i32 to vector<1x512xi32>
    %376 = arith.cmpi sge, %1, %375 : vector<1x512xi32>
    %377 = arith.andi %374, %376 : vector<1x512xi1>
    %c16_i32_124 = arith.constant 16 : i32
    %378 = vector.broadcast %c16_i32_124 : i32 to vector<1x512xi32>
    %379 = arith.cmpi slt, %1, %378 : vector<1x512xi32>
    %380 = arith.andi %377, %379 : vector<1x512xi1>
    %cst_125 = arith.constant 0.000000e+00 : f32
    %381 = vector.shape_cast %380 : vector<1x512xi1> to vector<1x512xi1>
    %382 = vector.broadcast %381 : vector<1x512xi1> to vector<8x512xi1>
    %383 = vector.broadcast %cst_125 : f32 to vector<8x512xf32>
    %384 = arith.select %382, %369, %383 : vector<8x512xi1>, vector<8x512xf32>
    %c45_i32 = arith.constant 45 : i32
    %385 = tpu.dynamic_rotate %351 by %c45_i32 dim 1 : vector<8x512xf32>, i32 -> vector<8x512xf32>
    %c3_i32_126 = arith.constant 3 : i32
    %386 = vector.broadcast %c3_i32_126 : i32 to vector<1x512xi32>
    %387 = arith.cmpi sge, %0, %386 : vector<1x512xi32>
    %c19_i32_127 = arith.constant 19 : i32
    %388 = vector.broadcast %c19_i32_127 : i32 to vector<1x512xi32>
    %389 = arith.cmpi slt, %0, %388 : vector<1x512xi32>
    %390 = arith.andi %387, %389 : vector<1x512xi1>
    %c-3_i32 = arith.constant -3 : i32
    %391 = vector.broadcast %c-3_i32 : i32 to vector<1x512xi32>
    %392 = arith.cmpi sge, %1, %391 : vector<1x512xi32>
    %393 = arith.andi %390, %392 : vector<1x512xi1>
    %c13_i32 = arith.constant 13 : i32
    %394 = vector.broadcast %c13_i32 : i32 to vector<1x512xi32>
    %395 = arith.cmpi slt, %1, %394 : vector<1x512xi32>
    %396 = arith.andi %393, %395 : vector<1x512xi1>
    %cst_128 = arith.constant 0.000000e+00 : f32
    %397 = vector.shape_cast %396 : vector<1x512xi1> to vector<1x512xi1>
    %398 = vector.broadcast %397 : vector<1x512xi1> to vector<8x512xi1>
    %399 = vector.broadcast %cst_128 : f32 to vector<8x512xf32>
    %400 = arith.select %398, %385, %399 : vector<8x512xi1>, vector<8x512xf32>
    %c3_i32_129 = arith.constant 3 : i32
    %401 = tpu.dynamic_rotate %351 by %c3_i32_129 dim 1 : vector<8x512xf32>, i32 -> vector<8x512xf32>
    %c0_i32_130 = arith.constant 0 : i32
    %402 = vector.broadcast %c0_i32_130 : i32 to vector<1x512xi32>
    %403 = arith.cmpi sge, %0, %402 : vector<1x512xi32>
    %c16_i32_131 = arith.constant 16 : i32
    %404 = vector.broadcast %c16_i32_131 : i32 to vector<1x512xi32>
    %405 = arith.cmpi slt, %0, %404 : vector<1x512xi32>
    %406 = arith.andi %403, %405 : vector<1x512xi1>
    %c3_i32_132 = arith.constant 3 : i32
    %407 = vector.broadcast %c3_i32_132 : i32 to vector<1x512xi32>
    %408 = arith.cmpi sge, %1, %407 : vector<1x512xi32>
    %409 = arith.andi %406, %408 : vector<1x512xi1>
    %c19_i32_133 = arith.constant 19 : i32
    %410 = vector.broadcast %c19_i32_133 : i32 to vector<1x512xi32>
    %411 = arith.cmpi slt, %1, %410 : vector<1x512xi32>
    %412 = arith.andi %409, %411 : vector<1x512xi1>
    %cst_134 = arith.constant 0.000000e+00 : f32
    %413 = vector.shape_cast %412 : vector<1x512xi1> to vector<1x512xi1>
    %414 = vector.broadcast %413 : vector<1x512xi1> to vector<8x512xi1>
    %415 = vector.broadcast %cst_134 : f32 to vector<8x512xf32>
    %416 = arith.select %414, %401, %415 : vector<8x512xi1>, vector<8x512xf32>
    %c0_i32_135 = arith.constant 0 : i32
    %417 = vector.broadcast %c0_i32_135 : i32 to vector<1x512xi32>
    %418 = arith.cmpi sge, %0, %417 : vector<1x512xi32>
    %c16_i32_136 = arith.constant 16 : i32
    %419 = vector.broadcast %c16_i32_136 : i32 to vector<1x512xi32>
    %420 = arith.cmpi slt, %0, %419 : vector<1x512xi32>
    %421 = arith.andi %418, %420 : vector<1x512xi1>
    %c0_i32_137 = arith.constant 0 : i32
    %422 = vector.broadcast %c0_i32_137 : i32 to vector<1x512xi32>
    %423 = arith.cmpi sge, %1, %422 : vector<1x512xi32>
    %424 = arith.andi %421, %423 : vector<1x512xi1>
    %c16_i32_138 = arith.constant 16 : i32
    %425 = vector.broadcast %c16_i32_138 : i32 to vector<1x512xi32>
    %426 = arith.cmpi slt, %1, %425 : vector<1x512xi32>
    %427 = arith.andi %424, %426 : vector<1x512xi1>
    %cst_139 = arith.constant 0.000000e+00 : f32
    %428 = vector.shape_cast %427 : vector<1x512xi1> to vector<1x512xi1>
    %429 = vector.broadcast %428 : vector<1x512xi1> to vector<8x512xi1>
    %430 = vector.broadcast %cst_139 : f32 to vector<8x512xf32>
    %431 = arith.select %429, %351, %430 : vector<8x512xi1>, vector<8x512xf32>
    %c509_i32 = arith.constant 509 : i32
    %432 = tpu.dynamic_rotate %351 by %c509_i32 dim 1 : vector<8x512xf32>, i32 -> vector<8x512xf32>
    %c0_i32_140 = arith.constant 0 : i32
    %433 = vector.broadcast %c0_i32_140 : i32 to vector<1x512xi32>
    %434 = arith.cmpi sge, %0, %433 : vector<1x512xi32>
    %c16_i32_141 = arith.constant 16 : i32
    %435 = vector.broadcast %c16_i32_141 : i32 to vector<1x512xi32>
    %436 = arith.cmpi slt, %0, %435 : vector<1x512xi32>
    %437 = arith.andi %434, %436 : vector<1x512xi1>
    %c-3_i32_142 = arith.constant -3 : i32
    %438 = vector.broadcast %c-3_i32_142 : i32 to vector<1x512xi32>
    %439 = arith.cmpi sge, %1, %438 : vector<1x512xi32>
    %440 = arith.andi %437, %439 : vector<1x512xi1>
    %c13_i32_143 = arith.constant 13 : i32
    %441 = vector.broadcast %c13_i32_143 : i32 to vector<1x512xi32>
    %442 = arith.cmpi slt, %1, %441 : vector<1x512xi32>
    %443 = arith.andi %440, %442 : vector<1x512xi1>
    %cst_144 = arith.constant 0.000000e+00 : f32
    %444 = vector.shape_cast %443 : vector<1x512xi1> to vector<1x512xi1>
    %445 = vector.broadcast %444 : vector<1x512xi1> to vector<8x512xi1>
    %446 = vector.broadcast %cst_144 : f32 to vector<8x512xf32>
    %447 = arith.select %445, %432, %446 : vector<8x512xi1>, vector<8x512xf32>
    %c467_i32 = arith.constant 467 : i32
    %448 = tpu.dynamic_rotate %351 by %c467_i32 dim 1 : vector<8x512xf32>, i32 -> vector<8x512xf32>
    %c-3_i32_145 = arith.constant -3 : i32
    %449 = vector.broadcast %c-3_i32_145 : i32 to vector<1x512xi32>
    %450 = arith.cmpi sge, %0, %449 : vector<1x512xi32>
    %c13_i32_146 = arith.constant 13 : i32
    %451 = vector.broadcast %c13_i32_146 : i32 to vector<1x512xi32>
    %452 = arith.cmpi slt, %0, %451 : vector<1x512xi32>
    %453 = arith.andi %450, %452 : vector<1x512xi1>
    %c3_i32_147 = arith.constant 3 : i32
    %454 = vector.broadcast %c3_i32_147 : i32 to vector<1x512xi32>
    %455 = arith.cmpi sge, %1, %454 : vector<1x512xi32>
    %456 = arith.andi %453, %455 : vector<1x512xi1>
    %c19_i32_148 = arith.constant 19 : i32
    %457 = vector.broadcast %c19_i32_148 : i32 to vector<1x512xi32>
    %458 = arith.cmpi slt, %1, %457 : vector<1x512xi32>
    %459 = arith.andi %456, %458 : vector<1x512xi1>
    %cst_149 = arith.constant 0.000000e+00 : f32
    %460 = vector.shape_cast %459 : vector<1x512xi1> to vector<1x512xi1>
    %461 = vector.broadcast %460 : vector<1x512xi1> to vector<8x512xi1>
    %462 = vector.broadcast %cst_149 : f32 to vector<8x512xf32>
    %463 = arith.select %461, %448, %462 : vector<8x512xi1>, vector<8x512xf32>
    %c464_i32 = arith.constant 464 : i32
    %464 = tpu.dynamic_rotate %351 by %c464_i32 dim 1 : vector<8x512xf32>, i32 -> vector<8x512xf32>
    %c-3_i32_150 = arith.constant -3 : i32
    %465 = vector.broadcast %c-3_i32_150 : i32 to vector<1x512xi32>
    %466 = arith.cmpi sge, %0, %465 : vector<1x512xi32>
    %c13_i32_151 = arith.constant 13 : i32
    %467 = vector.broadcast %c13_i32_151 : i32 to vector<1x512xi32>
    %468 = arith.cmpi slt, %0, %467 : vector<1x512xi32>
    %469 = arith.andi %466, %468 : vector<1x512xi1>
    %c0_i32_152 = arith.constant 0 : i32
    %470 = vector.broadcast %c0_i32_152 : i32 to vector<1x512xi32>
    %471 = arith.cmpi sge, %1, %470 : vector<1x512xi32>
    %472 = arith.andi %469, %471 : vector<1x512xi1>
    %c16_i32_153 = arith.constant 16 : i32
    %473 = vector.broadcast %c16_i32_153 : i32 to vector<1x512xi32>
    %474 = arith.cmpi slt, %1, %473 : vector<1x512xi32>
    %475 = arith.andi %472, %474 : vector<1x512xi1>
    %cst_154 = arith.constant 0.000000e+00 : f32
    %476 = vector.shape_cast %475 : vector<1x512xi1> to vector<1x512xi1>
    %477 = vector.broadcast %476 : vector<1x512xi1> to vector<8x512xi1>
    %478 = vector.broadcast %cst_154 : f32 to vector<8x512xf32>
    %479 = arith.select %477, %464, %478 : vector<8x512xi1>, vector<8x512xf32>
    %c461_i32 = arith.constant 461 : i32
    %480 = tpu.dynamic_rotate %351 by %c461_i32 dim 1 : vector<8x512xf32>, i32 -> vector<8x512xf32>
    %c-3_i32_155 = arith.constant -3 : i32
    %481 = vector.broadcast %c-3_i32_155 : i32 to vector<1x512xi32>
    %482 = arith.cmpi sge, %0, %481 : vector<1x512xi32>
    %c13_i32_156 = arith.constant 13 : i32
    %483 = vector.broadcast %c13_i32_156 : i32 to vector<1x512xi32>
    %484 = arith.cmpi slt, %0, %483 : vector<1x512xi32>
    %485 = arith.andi %482, %484 : vector<1x512xi1>
    %c-3_i32_157 = arith.constant -3 : i32
    %486 = vector.broadcast %c-3_i32_157 : i32 to vector<1x512xi32>
    %487 = arith.cmpi sge, %1, %486 : vector<1x512xi32>
    %488 = arith.andi %485, %487 : vector<1x512xi1>
    %c13_i32_158 = arith.constant 13 : i32
    %489 = vector.broadcast %c13_i32_158 : i32 to vector<1x512xi32>
    %490 = arith.cmpi slt, %1, %489 : vector<1x512xi32>
    %491 = arith.andi %488, %490 : vector<1x512xi1>
    %cst_159 = arith.constant 0.000000e+00 : f32
    %492 = vector.shape_cast %491 : vector<1x512xi1> to vector<1x512xi1>
    %493 = vector.broadcast %492 : vector<1x512xi1> to vector<8x512xi1>
    %494 = vector.broadcast %cst_159 : f32 to vector<8x512xf32>
    %495 = arith.select %493, %480, %494 : vector<8x512xi1>, vector<8x512xf32>
    %496 = tpu.concatenate %368, %384, %400, %416, %431, %447, %463, %479, %495 in 0 : vector<8x512xf32>, vector<8x512xf32>, vector<8x512xf32>, vector<8x512xf32>, vector<8x512xf32>, vector<8x512xf32>, vector<8x512xf32>, vector<8x512xf32>, vector<8x512xf32> -> vector<72x512xf32>
    %497 = arith.truncf %496 : vector<72x512xf32> to vector<72x512xbf16>
    %cst_160 = arith.constant dense<0.000000e+00> : vector<8x512xf32>
    %498 = tpu.matmul %352, %497, %cst_160 {dimension_numbers = #tpu.dot_dimension_numbers<[1], [0], [0], [1], [0, 0, 1, 1], [], []>} : vector<8x72xbf16>, vector<72x512xbf16>, vector<8x512xf32> -> vector<8x512xf32>
    %cst_161 = arith.constant dense<0.000000e+00> : vector<8xf32>
    %499 = vector.multi_reduction <add>, %498, %cst_161 [1] : vector<8x512xf32> to vector<8xf32>
    %500 = vector.shape_cast %499 : vector<8xf32> to vector<8x1xf32>
    %cst_162 = arith.constant 0.001953125 : f32
    %501 = vector.broadcast %cst_162 : f32 to vector<8x1xf32>
    %502 = arith.mulf %500, %501 : vector<8x1xf32>
    %503 = arith.mulf %498, %498 : vector<8x512xf32>
    %cst_163 = arith.constant dense<0.000000e+00> : vector<8xf32>
    %504 = vector.multi_reduction <add>, %503, %cst_163 [1] : vector<8x512xf32> to vector<8xf32>
    %505 = vector.shape_cast %504 : vector<8xf32> to vector<8x1xf32>
    %cst_164 = arith.constant 0.001953125 : f32
    %506 = vector.broadcast %cst_164 : f32 to vector<8x1xf32>
    %507 = arith.mulf %505, %506 : vector<8x1xf32>
    %508 = arith.mulf %502, %502 : vector<8x1xf32>
    %509 = arith.subf %507, %508 : vector<8x1xf32>
    %cst_165 = arith.constant 0.000000e+00 : f32
    %510 = vector.broadcast %cst_165 : f32 to vector<8x1xf32>
    %511 = arith.maximumf %509, %510 : vector<8x1xf32>
    %c0_166 = arith.constant 0 : index
    %c2 = arith.constant 2 : index
    %512 = vector.load %arg4[%c0_166, %c2] : memref<8x3xf32, #tpu.memory_space<vmem>>, vector<8x1xf32>
    %cst_167 = arith.constant 9.99999974E-6 : f32
    %513 = vector.broadcast %cst_167 : f32 to vector<8x1xf32>
    %514 = arith.addf %511, %513 : vector<8x1xf32>
    %515 = math.rsqrt %514 : vector<8x1xf32>
    %516 = arith.mulf %512, %515 : vector<8x1xf32>
    %c0_168 = arith.constant 0 : index
    %c2_169 = arith.constant 2 : index
    %517 = vector.load %arg5[%c0_168, %c2_169] : memref<8x3xf32, #tpu.memory_space<vmem>>, vector<8x1xf32>
    %518 = arith.mulf %502, %516 : vector<8x1xf32>
    %519 = arith.subf %517, %518 : vector<8x1xf32>
    %520 = vector.broadcast %516 : vector<8x1xf32> to vector<8x512xf32>
    %521 = arith.mulf %498, %520 : vector<8x512xf32>
    %522 = vector.broadcast %519 : vector<8x1xf32> to vector<8x512xf32>
    %523 = arith.addf %521, %522 : vector<8x512xf32>
    %cst_170 = arith.constant 0.000000e+00 : f32
    %524 = vector.broadcast %cst_170 : f32 to vector<8x512xf32>
    %525 = arith.maximumf %523, %524 : vector<8x512xf32>
    %c0_171 = arith.constant 0 : index
    %c0_172 = arith.constant 0 : index
    %526 = vector.load %arg8[%c0_171, %c0_172] : memref<8x512xf32, #tpu.memory_space<vmem>>, vector<8x512xf32>
    tpu.vector_store %arg8[%c0_171, %c0_172], %525 {strides = array<i32>} : memref<8x512xf32, #tpu.memory_space<vmem>>, vector<8x512xf32>,
    return
  }
}

</mosaic_0001>

<llo_original>
// kernel: widescope_conv2d_block.1
$region0: #{widescope_conv2d_block.1}
  #allocation0 [shape = 'u32[]', space=smem, size = 0x4, offset = 0x4, fixed_abs, tag = 'smem constant byte address 0x4 - core index']
  #allocation1 [shape = 'u32[144,128]{1,0:T(1,128)}', space=vmem, size = 0x12000, scoped, tag = 'internal scratch']
  %s0 = inlined_call_operand.vmem [shape: bf16[4,512], index: 0, kind: input, shape index: {}]
  %s1 = inlined_call_operand.vmem [shape: bf16[8,36], index: 1, kind: input, shape index: {}]
  %s2 = inlined_call_operand.vmem [shape: bf16[8,72], index: 2, kind: input, shape index: {}]
  %s3 = inlined_call_operand.vmem [shape: bf16[8,72], index: 3, kind: input, shape index: {}]
  %s4 = inlined_call_operand.vmem [shape: f32[8,3], index: 4, kind: input, shape index: {}]
  %s5 = inlined_call_operand.vmem [shape: f32[8,3], index: 5, kind: input, shape index: {}]
  %s6 = inlined_call_operand.vmem [shape: s32[1,512], index: 6, kind: input, shape index: {}]
  %s7 = inlined_call_operand.vmem [shape: s32[1,512], index: 7, kind: input, shape index: {}]
  %s8 = inlined_call_operand.vmem [shape: f32[8,512], index: 8, kind: output, shape index: {}]
  %s9 = sld [smem:[#allocation0]]
  $region42: #{widescope_conv2d_block.1} parent=0
    _
  %s11 = ssub.s32 1, %s9
  %s12 = scalar_select 0, %s11, %s9
  // Predicated region
  $region2: #{widescope_conv2d_block.1} parent=0 // pred_check
    _
  $region3: #{widescope_conv2d_block.1} parent=0 // pred_check_branch
    %14 = sbr.rel (0) target = $region5
  $region4: #{widescope_conv2d_block.1} parent=0 // pred_region
    _
  $region5: #{widescope_conv2d_block.1} parent=0 // pred_fallthru
    _
  // Predicated region
  $region6: #{widescope_conv2d_block.1} parent=0 // pred_check
    _
  $region7: #{widescope_conv2d_block.1} parent=0 // pred_check_branch
    %16 = sbr.rel (0) target = $region9
  $region8: #{widescope_conv2d_block.1} parent=0 // pred_region
    _
  $region9: #{widescope_conv2d_block.1} parent=0 // pred_fallthru
    _
  // Predicated region
  $region10: #{widescope_conv2d_block.1} parent=0 // pred_check
    _
  $region11: #{widescope_conv2d_block.1} parent=0 // pred_check_branch
    %18 = sbr.rel (0) target = $region13
  $region12: #{widescope_conv2d_block.1} parent=0 // pred_region
    _
  $region13: #{widescope_conv2d_block.1} parent=0 // pred_fallthru
    _
  // Predicated region
  $region14: #{widescope_conv2d_block.1} parent=0 // pred_check
    _
  $region15: #{widescope_conv2d_block.1} parent=0 // pred_check_branch
    %20 = sbr.rel (0) target = $region17
  $region16: #{widescope_conv2d_block.1} parent=0 // pred_region
    _
  $region17: #{widescope_conv2d_block.1} parent=0 // pred_fallthru
    _
  // Predicated region
  $region18: #{widescope_conv2d_block.1} parent=0 // pred_check
    _
  $region19: #{widescope_conv2d_block.1} parent=0 // pred_check_branch
    %22 = sbr.rel (0) target = $region21
  $region20: #{widescope_conv2d_block.1} parent=0 // pred_region
    _
  $region21: #{widescope_conv2d_block.1} parent=0 // pred_fallthru
    _
  // Predicated region
  $region22: #{widescope_conv2d_block.1} parent=0 // pred_check
    _
  $region23: #{widescope_conv2d_block.1} parent=0 // pred_check_branch
    %24 = sbr.rel (0) target = $region25
  $region24: #{widescope_conv2d_block.1} parent=0 // pred_region
    _
  $region25: #{widescope_conv2d_block.1} parent=0 // pred_fallthru
    _
  // Predicated region
  $region26: #{widescope_conv2d_block.1} parent=0 // pred_check
    _
  $region27: #{widescope_conv2d_block.1} parent=0 // pred_check_branch
    %26 = sbr.rel (0) target = $region29
  $region28: #{widescope_conv2d_block.1} parent=0 // pred_region
    _
  $region29: #{widescope_conv2d_block.1} parent=0 // pred_fallthru
    _
  // Predicated region
  $region30: #{widescope_conv2d_block.1} parent=0 // pred_check
    _
  $region31: #{widescope_conv2d_block.1} parent=0 // pred_check_branch
    %28 = sbr.rel (0) target = $region33
  $region32: #{widescope_conv2d_block.1} parent=0 // pred_region
    _
  $region33: #{widescope_conv2d_block.1} parent=0 // pred_fallthru
    _
  %v30 = vld [vmem:[%s6] sm:$0xf]
  %v31 = vld [vmem:[%s7] sm:$0xf]
  %v32 = vld [vmem:[%s0] sm:$0xff]
  %v33 = vunpack.c.l.bf16 %v32
  %v34 = vunpack.c.h.bf16 %v32
  %v35 = vld [vmem:[%s1] sm:$0xf]
  %v38 = vcombine.high %v33, %v33
  %v39 = vcombine.high %v34, %v34
  %42 = vrot.lane.b32.xlu0 %v33, 17
  %v43 = vpop.permute.xlu0 %42
  %44 = vrot.lane.b32.xlu0 %v38, 17
  %v45 = vpop.permute.xlu0 %44
  %46 = vrot.lane.b32.xlu0 %v34, 17
  %v47 = vpop.permute.xlu0 %46
  %48 = vrot.lane.b32.xlu0 %v39, 17
  %v49 = vpop.permute.xlu0 %48
  %v50 = vlaneseq
  %v51 = vand.u32 %v50, 127
  %vm52 = vcmp.lt.s32.totalorder %v51, 17
  %v53 = vsel %vm52, %v47, %v49
  %v54 = vsel %vm52, %v45, %v47
  %v55 = vsel %vm52, %v43, %v45
  %v56 = vsel %vm52, %v49, %v43
  %vm57 = vcmp.ge.s32.totalorder %v30, 1
  %vm58 = vcmp.lt.s32.totalorder %v30, 17
  %vm59 = vmand %vm57, %vm58
  %vm60 = vcmp.ge.s32.totalorder %v31, 1
  %vm61 = vmand %vm59, %vm60
  %vm62 = vcmp.lt.s32.totalorder %v31, 17
  %vm63 = vmand %vm61, %vm62
  %v64 = vsel %vm63, 1, 0
  %v65 = vlaneseq
  %v66 = vshrl.u32 %v65, 7
  %v67 = vsub.s32 0, %v66
  %v68 = vrot.slane %v64, %v67
  %v69 = vlaneseq
  %v70 = vshrl.u32 %v69, 7
  %v71 = vsub.s32 1, %v70
  %v72 = vrot.slane %v64, %v71
  %v73 = vlaneseq
  %v74 = vshrl.u32 %v73, 7
  %v75 = vsub.s32 2, %v74
  %v76 = vrot.slane %v64, %v75
  %v77 = vlaneseq
  %v78 = vshrl.u32 %v77, 7
  %v79 = vsub.s32 3, %v78
  %v80 = vrot.slane %v64, %v79
  %vm81 = vcmp.eq.s32.totalorder %v68, 1
  %vm82 = vcmp.eq.s32.totalorder %v72, 1
  %vm83 = vcmp.eq.s32.totalorder %v76, 1
  %vm84 = vcmp.eq.s32.totalorder %v80, 1
  %v85 = vsel %vm81, %v56, 0.0
  %v86 = vsel %vm82, %v55, 0.0
  %v87 = vsel %vm83, %v54, 0.0
  %v88 = vsel %vm84, %v53, 0.0
  %89 = vrot.lane.b32.xlu0 %v33, 16
  %v90 = vpop.permute.xlu0 %89
  %91 = vrot.lane.b32.xlu0 %v38, 16
  %v92 = vpop.permute.xlu0 %91
  %93 = vrot.lane.b32.xlu0 %v34, 16
  %v94 = vpop.permute.xlu0 %93
  %95 = vrot.lane.b32.xlu0 %v39, 16
  %v96 = vpop.permute.xlu0 %95
  %vm97 = vcmp.lt.s32.totalorder %v51, 16
  %v98 = vsel %vm97, %v94, %v96
  %v99 = vsel %vm97, %v92, %v94
  %v100 = vsel %vm97, %v90, %v92
  %v101 = vsel %vm97, %v96, %v90
  %vm102 = vcmp.ge.s32.totalorder %v31, 0
  %vm103 = vmand %vm59, %vm102
  %vm104 = vcmp.lt.s32.totalorder %v31, 16
  %vm105 = vmand %vm103, %vm104
  %v106 = vsel %vm105, 1, 0
  %v107 = vlaneseq
  %v108 = vshrl.u32 %v107, 7
  %v109 = vsub.s32 0, %v108
  %v110 = vrot.slane %v106, %v109
  %v111 = vlaneseq
  %v112 = vshrl.u32 %v111, 7
  %v113 = vsub.s32 1, %v112
  %v114 = vrot.slane %v106, %v113
  %v115 = vlaneseq
  %v116 = vshrl.u32 %v115, 7
  %v117 = vsub.s32 2, %v116
  %v118 = vrot.slane %v106, %v117
  %v119 = vlaneseq
  %v120 = vshrl.u32 %v119, 7
  %v121 = vsub.s32 3, %v120
  %v122 = vrot.slane %v106, %v121
  %vm123 = vcmp.eq.s32.totalorder %v110, 1
  %vm124 = vcmp.eq.s32.totalorder %v114, 1
  %vm125 = vcmp.eq.s32.totalorder %v118, 1
  %vm126 = vcmp.eq.s32.totalorder %v122, 1
  %v127 = vsel %vm123, %v101, 0.0
  %v128 = vsel %vm124, %v100, 0.0
  %v129 = vsel %vm125, %v99, 0.0
  %v130 = vsel %vm126, %v98, 0.0
  %131 = vrot.lane.b32.xlu0 %v33, 15
  %v132 = vpop.permute.xlu0 %131
  %133 = vrot.lane.b32.xlu0 %v38, 15
  %v134 = vpop.permute.xlu0 %133
  %135 = vrot.lane.b32.xlu0 %v34, 15
  %v136 = vpop.permute.xlu0 %135
  %137 = vrot.lane.b32.xlu0 %v39, 15
  %v138 = vpop.permute.xlu0 %137
  %vm139 = vcmp.lt.s32.totalorder %v51, 15
  %v140 = vsel %vm139, %v136, %v138
  %v141 = vsel %vm139, %v134, %v136
  %v142 = vsel %vm139, %v132, %v134
  %v143 = vsel %vm139, %v138, %v132
  %vm144 = vcmp.ge.s32.totalorder %v31, 4294967295
  %vm145 = vmand %vm59, %vm144
  %vm146 = vcmp.lt.s32.totalorder %v31, 15
  %vm147 = vmand %vm145, %vm146
  %v148 = vsel %vm147, 1, 0
  %v149 = vlaneseq
  %v150 = vshrl.u32 %v149, 7
  %v151 = vsub.s32 0, %v150
  %v152 = vrot.slane %v148, %v151
  %v153 = vlaneseq
  %v154 = vshrl.u32 %v153, 7
  %v155 = vsub.s32 1, %v154
  %v156 = vrot.slane %v148, %v155
  %v157 = vlaneseq
  %v158 = vshrl.u32 %v157, 7
  %v159 = vsub.s32 2, %v158
  %v160 = vrot.slane %v148, %v159
  %v161 = vlaneseq
  %v162 = vshrl.u32 %v161, 7
  %v163 = vsub.s32 3, %v162
  %v164 = vrot.slane %v148, %v163
  %vm165 = vcmp.eq.s32.totalorder %v152, 1
  %vm166 = vcmp.eq.s32.totalorder %v156, 1
  %vm167 = vcmp.eq.s32.totalorder %v160, 1
  %vm168 = vcmp.eq.s32.totalorder %v164, 1
  %v169 = vsel %vm165, %v143, 0.0
  %v170 = vsel %vm166, %v142, 0.0
  %v171 = vsel %vm167, %v141, 0.0
  %v172 = vsel %vm168, %v140, 0.0
  %173 = vrot.lane.b32.xlu0 %v33, 1
  %v174 = vpop.permute.xlu0 %173
  %175 = vrot.lane.b32.xlu0 %v38, 1
  %v176 = vpop.permute.xlu0 %175
  %177 = vrot.lane.b32.xlu0 %v34, 1
  %v178 = vpop.permute.xlu0 %177
  %179 = vrot.lane.b32.xlu0 %v39, 1
  %v180 = vpop.permute.xlu0 %179
  %vm181 = vcmp.lt.s32.totalorder %v51, 1
  %v182 = vsel %vm181, %v178, %v180
  %v183 = vsel %vm181, %v176, %v178
  %v184 = vsel %vm181, %v174, %v176
  %v185 = vsel %vm181, %v180, %v174
  %vm186 = vcmp.ge.s32.totalorder %v30, 0
  %vm187 = vcmp.lt.s32.totalorder %v30, 16
  %vm188 = vmand %vm186, %vm187
  %vm189 = vmand %vm188, %vm60
  %vm190 = vmand %vm189, %vm62
  %v191 = vsel %vm190, 1, 0
  %v192 = vlaneseq
  %v193 = vshrl.u32 %v192, 7
  %v194 = vsub.s32 0, %v193
  %v195 = vrot.slane %v191, %v194
  %v196 = vlaneseq
  %v197 = vshrl.u32 %v196, 7
  %v198 = vsub.s32 1, %v197
  %v199 = vrot.slane %v191, %v198
  %v200 = vlaneseq
  %v201 = vshrl.u32 %v200, 7
  %v202 = vsub.s32 2, %v201
  %v203 = vrot.slane %v191, %v202
  %v204 = vlaneseq
  %v205 = vshrl.u32 %v204, 7
  %v206 = vsub.s32 3, %v205
  %v207 = vrot.slane %v191, %v206
  %vm208 = vcmp.eq.s32.totalorder %v195, 1
  %vm209 = vcmp.eq.s32.totalorder %v199, 1
  %vm210 = vcmp.eq.s32.totalorder %v203, 1
  %vm211 = vcmp.eq.s32.totalorder %v207, 1
  %v212 = vsel %vm208, %v185, 0.0
  %v213 = vsel %vm209, %v184, 0.0
  %v214 = vsel %vm210, %v183, 0.0
  %v215 = vsel %vm211, %v182, 0.0
  %vm216 = vmand %vm188, %vm102
  %vm217 = vmand %vm216, %vm104
  %v218 = vsel %vm217, 1, 0
  %v219 = vlaneseq
  %v220 = vshrl.u32 %v219, 7
  %v221 = vsub.s32 0, %v220
  %v222 = vrot.slane %v218, %v221
  %v223 = vlaneseq
  %v224 = vshrl.u32 %v223, 7
  %v225 = vsub.s32 1, %v224
  %v226 = vrot.slane %v218, %v225
  %v227 = vlaneseq
  %v228 = vshrl.u32 %v227, 7
  %v229 = vsub.s32 2, %v228
  %v230 = vrot.slane %v218, %v229
  %v231 = vlaneseq
  %v232 = vshrl.u32 %v231, 7
  %v233 = vsub.s32 3, %v232
  %v234 = vrot.slane %v218, %v233
  %vm235 = vcmp.eq.s32.totalorder %v222, 1
  %vm236 = vcmp.eq.s32.totalorder %v226, 1
  %vm237 = vcmp.eq.s32.totalorder %v230, 1
  %vm238 = vcmp.eq.s32.totalorder %v234, 1
  %v239 = vsel %vm235, %v33, 0.0
  %v240 = vsel %vm236, %v38, 0.0
  %v241 = vsel %vm237, %v34, 0.0
  %v242 = vsel %vm238, %v39, 0.0
  %243 = vrot.lane.b32.xlu0 %v33, 127
  %v244 = vpop.permute.xlu0 %243
  %245 = vrot.lane.b32.xlu0 %v38, 127
  %v246 = vpop.permute.xlu0 %245
  %247 = vrot.lane.b32.xlu0 %v34, 127
  %v248 = vpop.permute.xlu0 %247
  %249 = vrot.lane.b32.xlu0 %v39, 127
  %v250 = vpop.permute.xlu0 %249
  %vm251 = vcmp.lt.s32.totalorder %v51, 127
  %v252 = vsel %vm251, %v248, %v250
  %v253 = vsel %vm251, %v246, %v248
  %v254 = vsel %vm251, %v244, %v246
  %v255 = vsel %vm251, %v250, %v244
  %vm256 = vmand %vm188, %vm144
  %vm257 = vmand %vm256, %vm146
  %v258 = vsel %vm257, 1, 0
  %v259 = vlaneseq
  %v260 = vshrl.u32 %v259, 7
  %v261 = vsub.s32 0, %v260
  %v262 = vrot.slane %v258, %v261
  %v263 = vlaneseq
  %v264 = vshrl.u32 %v263, 7
  %v265 = vsub.s32 1, %v264
  %v266 = vrot.slane %v258, %v265
  %v267 = vlaneseq
  %v268 = vshrl.u32 %v267, 7
  %v269 = vsub.s32 2, %v268
  %v270 = vrot.slane %v258, %v269
  %v271 = vlaneseq
  %v272 = vshrl.u32 %v271, 7
  %v273 = vsub.s32 3, %v272
  %v274 = vrot.slane %v258, %v273
  %vm275 = vcmp.eq.s32.totalorder %v262, 1
  %vm276 = vcmp.eq.s32.totalorder %v266, 1
  %vm277 = vcmp.eq.s32.totalorder %v270, 1
  %vm278 = vcmp.eq.s32.totalorder %v274, 1
  %v279 = vsel %vm275, %v254, 0.0
  %v280 = vsel %vm276, %v253, 0.0
  %v281 = vsel %vm277, %v252, 0.0
  %v282 = vsel %vm278, %v255, 0.0
  %283 = vrot.lane.b32.xlu0 %v33, 113
  %v284 = vpop.permute.xlu0 %283
  %285 = vrot.lane.b32.xlu0 %v38, 113
  %v286 = vpop.permute.xlu0 %285
  %287 = vrot.lane.b32.xlu0 %v34, 113
  %v288 = vpop.permute.xlu0 %287
  %289 = vrot.lane.b32.xlu0 %v39, 113
  %v290 = vpop.permute.xlu0 %289
  %vm291 = vcmp.lt.s32.totalorder %v51, 113
  %v292 = vsel %vm291, %v288, %v290
  %v293 = vsel %vm291, %v286, %v288
  %v294 = vsel %vm291, %v284, %v286
  %v295 = vsel %vm291, %v290, %v284
  %vm296 = vcmp.ge.s32.totalorder %v30, 4294967295
  %vm297 = vcmp.lt.s32.totalorder %v30, 15
  %vm298 = vmand %vm296, %vm297
  %vm299 = vmand %vm298, %vm60
  %vm300 = vmand %vm299, %vm62
  %v301 = vsel %vm300, 1, 0
  %v302 = vlaneseq
  %v303 = vshrl.u32 %v302, 7
  %v304 = vsub.s32 0, %v303
  %v305 = vrot.slane %v301, %v304
  %v306 = vlaneseq
  %v307 = vshrl.u32 %v306, 7
  %v308 = vsub.s32 1, %v307
  %v309 = vrot.slane %v301, %v308
  %v310 = vlaneseq
  %v311 = vshrl.u32 %v310, 7
  %v312 = vsub.s32 2, %v311
  %v313 = vrot.slane %v301, %v312
  %v314 = vlaneseq
  %v315 = vshrl.u32 %v314, 7
  %v316 = vsub.s32 3, %v315
  %v317 = vrot.slane %v301, %v316
  %vm318 = vcmp.eq.s32.totalorder %v305, 1
  %vm319 = vcmp.eq.s32.totalorder %v309, 1
  %vm320 = vcmp.eq.s32.totalorder %v313, 1
  %vm321 = vcmp.eq.s32.totalorder %v317, 1
  %v322 = vsel %vm318, %v294, 0.0
  %v323 = vsel %vm319, %v293, 0.0
  %v324 = vsel %vm320, %v292, 0.0
  %v325 = vsel %vm321, %v295, 0.0
  %326 = vrot.lane.b32.xlu0 %v33, 112
  %v327 = vpop.permute.xlu0 %326
  %328 = vrot.lane.b32.xlu0 %v38, 112
  %v329 = vpop.permute.xlu0 %328
  %330 = vrot.lane.b32.xlu0 %v34, 112
  %v331 = vpop.permute.xlu0 %330
  %332 = vrot.lane.b32.xlu0 %v39, 112
  %v333 = vpop.permute.xlu0 %332
  %vm334 = vcmp.lt.s32.totalorder %v51, 112
  %v335 = vsel %vm334, %v331, %v333
  %v336 = vsel %vm334, %v329, %v331
  %v337 = vsel %vm334, %v327, %v329
  %v338 = vsel %vm334, %v333, %v327
  %vm339 = vmand %vm298, %vm102
  %vm340 = vmand %vm339, %vm104
  %v341 = vsel %vm340, 1, 0
  %v342 = vlaneseq
  %v343 = vshrl.u32 %v342, 7
  %v344 = vsub.s32 0, %v343
  %v345 = vrot.slane %v341, %v344
  %v346 = vlaneseq
  %v347 = vshrl.u32 %v346, 7
  %v348 = vsub.s32 1, %v347
  %v349 = vrot.slane %v341, %v348
  %v350 = vlaneseq
  %v351 = vshrl.u32 %v350, 7
  %v352 = vsub.s32 2, %v351
  %v353 = vrot.slane %v341, %v352
  %v354 = vlaneseq
  %v355 = vshrl.u32 %v354, 7
  %v356 = vsub.s32 3, %v355
  %v357 = vrot.slane %v341, %v356
  %vm358 = vcmp.eq.s32.totalorder %v345, 1
  %vm359 = vcmp.eq.s32.totalorder %v349, 1
  %vm360 = vcmp.eq.s32.totalorder %v353, 1
  %vm361 = vcmp.eq.s32.totalorder %v357, 1
  %v362 = vsel %vm358, %v337, 0.0
  %v363 = vsel %vm359, %v336, 0.0
  %v364 = vsel %vm360, %v335, 0.0
  %v365 = vsel %vm361, %v338, 0.0
  %366 = vrot.lane.b32.xlu0 %v33, 111
  %v367 = vpop.permute.xlu0 %366
  %368 = vrot.lane.b32.xlu0 %v38, 111
  %v369 = vpop.permute.xlu0 %368
  %370 = vrot.lane.b32.xlu0 %v34, 111
  %v371 = vpop.permute.xlu0 %370
  %372 = vrot.lane.b32.xlu0 %v39, 111
  %v373 = vpop.permute.xlu0 %372
  %vm374 = vcmp.lt.s32.totalorder %v51, 111
  %v375 = vsel %vm374, %v371, %v373
  %v376 = vsel %vm374, %v369, %v371
  %v377 = vsel %vm374, %v367, %v369
  %v378 = vsel %vm374, %v373, %v367
  %vm379 = vmand %vm298, %vm144
  %vm380 = vmand %vm379, %vm146
  %v381 = vsel %vm380, 1, 0
  %v382 = vlaneseq
  %v383 = vshrl.u32 %v382, 7
  %v384 = vsub.s32 0, %v383
  %v385 = vrot.slane %v381, %v384
  %v386 = vlaneseq
  %v387 = vshrl.u32 %v386, 7
  %v388 = vsub.s32 1, %v387
  %v389 = vrot.slane %v381, %v388
  %v390 = vlaneseq
  %v391 = vshrl.u32 %v390, 7
  %v392 = vsub.s32 2, %v391
  %v393 = vrot.slane %v381, %v392
  %v394 = vlaneseq
  %v395 = vshrl.u32 %v394, 7
  %v396 = vsub.s32 3, %v395
  %v397 = vrot.slane %v381, %v396
  %vm398 = vcmp.eq.s32.totalorder %v385, 1
  %vm399 = vcmp.eq.s32.totalorder %v389, 1
  %vm400 = vcmp.eq.s32.totalorder %v393, 1
  %vm401 = vcmp.eq.s32.totalorder %v397, 1
  %v402 = vsel %vm398, %v377, 0.0
  %v403 = vsel %vm399, %v376, 0.0
  %v404 = vsel %vm400, %v375, 0.0
  %v405 = vsel %vm401, %v378, 0.0
  %v410 = vrot.slane %v127, 4
  %v411 = vrot.slane %v128, 4
  %v412 = vrot.slane %v129, 4
  %v413 = vrot.slane %v130, 4
  %v422 = vrot.slane %v212, 4
  %v423 = vrot.slane %v213, 4
  %v424 = vrot.slane %v214, 4
  %v425 = vrot.slane %v215, 4
  %v434 = vrot.slane %v279, 4
  %v435 = vrot.slane %v280, 4
  %v436 = vrot.slane %v281, 4
  %v437 = vrot.slane %v282, 4
  %v446 = vrot.slane %v362, 4
  %v447 = vrot.slane %v363, 4
  %v448 = vrot.slane %v364, 4
  %v449 = vrot.slane %v365, 4
  %vm454 = vcmask 1043456
  %v455 = vsel %vm454, %v85, %v410
  %v456 = vsel %vm454, %v86, %v411
  %v457 = vsel %vm454, %v87, %v412
  %v458 = vsel %vm454, %v88, %v413
  %v459 = vsel %vm454, %v169, %v422
  %v460 = vsel %vm454, %v170, %v423
  %v461 = vsel %vm454, %v171, %v424
  %v462 = vsel %vm454, %v172, %v425
  %v463 = vsel %vm454, %v239, %v434
  %v464 = vsel %vm454, %v240, %v435
  %v465 = vsel %vm454, %v241, %v436
  %v466 = vsel %vm454, %v242, %v437
  %v467 = vsel %vm454, %v322, %v446
  %v468 = vsel %vm454, %v323, %v447
  %v469 = vsel %vm454, %v324, %v448
  %v470 = vsel %vm454, %v325, %v449
  %v471 = vpack.c.bf16 %v459, %v455
  %v472 = vpack.c.bf16 %v460, %v456
  %v473 = vpack.c.bf16 %v461, %v457
  %v474 = vpack.c.bf16 %v462, %v458
  %v475 = vpack.c.bf16 %v467, %v463
  %v476 = vpack.c.bf16 %v468, %v464
  %v477 = vpack.c.bf16 %v469, %v465
  %v478 = vpack.c.bf16 %v470, %v466
  %v479 = vpack.c.bf16 %v402, %v402
  %v480 = vpack.c.bf16 %v403, %v403
  %v481 = vpack.c.bf16 %v404, %v404
  %v482 = vpack.c.bf16 %v405, %v405
  %vm483 = vcmask 293888
  %v485 = vsel %vm483, %v35, 0
  %vm487 = vcmask 1041408
  %v489 = vsel %vm487, %v479, 0
  %v492 = vsel %vm487, %v480, 0
  %v495 = vsel %vm487, %v481, 0
  %v498 = vsel %vm487, %v482, 0
  %500 = vmatprep.subr.bf16.mxu0 0
  %501 = vmatpush1.bf16.msra.mxu0 0
  %502 = vmatprep.subr.bf16.mxu0 0
  %503 = vmatpush1.bf16.msra.mxu0 0
  %504 = vmatprep.subr.bf16.mxu0 0
  %505 = vmatpush1.bf16.msra.mxu0 0
  %506 = vmatprep.subr.bf16.mxu0 0
  %507 = vmatpush1.bf16.msra.mxu0 0
  %508 = vmatprep.subr.bf16.mxu0 0
  %509 = vmatpush1.bf16.msra.mxu0 0
  %510 = vmatprep.subr.bf16.mxu0 %v492
  %511 = vmatpush1.bf16.msra.mxu0 %v489
  %512 = vmatprep.subr.bf16.mxu0 %v476
  %513 = vmatpush1.bf16.msra.mxu0 %v475
  %514 = vmatprep.subr.bf16.mxu0 %v472
  %515 = vmatpush1.bf16.msra.mxu0 %v471
  %516 = vmatprep.subr.bf16.mxu0 0
  %517 = vmatpush2.bf16.msra.mxu0 0
  %518 = vmatprep.subr.bf16.mxu0 0
  %519 = vmatpush2.bf16.msra.mxu0 0
  %520 = vmatprep.subr.bf16.mxu0 0
  %521 = vmatpush2.bf16.msra.mxu0 0
  %522 = vmatprep.subr.bf16.mxu0 0
  %523 = vmatpush2.bf16.msra.mxu0 0
  %524 = vmatprep.subr.bf16.mxu0 0
  %525 = vmatpush2.bf16.msra.mxu0 0
  %526 = vmatprep.subr.bf16.mxu0 0
  %527 = vmatpush2.bf16.msra.mxu0 0
  %528 = vmatprep.subr.bf16.mxu0 0
  %529 = vmatpush2.bf16.msra.mxu0 0
  %530 = vmatprep.subr.bf16.mxu0 0
  %531 = vmatpush2.bf16.msra.mxu0 0
  %532 = vmatprep.mubr.bf16.mxu0 0
  %533 = vmatmul.mubr.bf16.gmra.mxu0 %v485
  %v534 = vpop.f32.mrf.mxu0
  %v535 = vadd.f32 0.0, %v534
  %v536 = vpop.f32.mrf.mxu0
  %v537 = vadd.f32 0.0, %v536
  %v538 = vpop.f32.mrf.mxu0
  %v539 = vpop.f32.mrf.mxu0
  %540 = vdwg.mxu0
  %541 = vmatprep.subr.bf16.mxu0 0
  %542 = vmatpush1.bf16.msra.mxu0 0
  %543 = vmatprep.subr.bf16.mxu0 0
  %544 = vmatpush1.bf16.msra.mxu0 0
  %545 = vmatprep.subr.bf16.mxu0 0
  %546 = vmatpush1.bf16.msra.mxu0 0
  %547 = vmatprep.subr.bf16.mxu0 0
  %548 = vmatpush1.bf16.msra.mxu0 0
  %549 = vmatprep.subr.bf16.mxu0 0
  %550 = vmatpush1.bf16.msra.mxu0 0
  %551 = vmatprep.subr.bf16.mxu0 %v498
  %552 = vmatpush1.bf16.msra.mxu0 %v495
  %553 = vmatprep.subr.bf16.mxu0 %v478
  %554 = vmatpush1.bf16.msra.mxu0 %v477
  %555 = vmatprep.subr.bf16.mxu0 %v474
  %556 = vmatpush1.bf16.msra.mxu0 %v473
  %557 = vmatprep.subr.bf16.mxu0 0
  %558 = vmatpush2.bf16.msra.mxu0 0
  %559 = vmatprep.subr.bf16.mxu0 0
  %560 = vmatpush2.bf16.msra.mxu0 0
  %561 = vmatprep.subr.bf16.mxu0 0
  %562 = vmatpush2.bf16.msra.mxu0 0
  %563 = vmatprep.subr.bf16.mxu0 0
  %564 = vmatpush2.bf16.msra.mxu0 0
  %565 = vmatprep.subr.bf16.mxu0 0
  %566 = vmatpush2.bf16.msra.mxu0 0
  %567 = vmatprep.subr.bf16.mxu0 0
  %568 = vmatpush2.bf16.msra.mxu0 0
  %569 = vmatprep.subr.bf16.mxu0 0
  %570 = vmatpush2.bf16.msra.mxu0 0
  %571 = vmatprep.subr.bf16.mxu0 0
  %572 = vmatpush2.bf16.msra.mxu0 0
  %573 = vmatprep.mubr.bf16.mxu0 0
  %574 = vmatmul.mubr.bf16.gmra.mxu0 %v485
  %v575 = vpop.f32.mrf.mxu0
  %v576 = vadd.f32 0.0, %v575
  %v577 = vpop.f32.mrf.mxu0
  %v578 = vadd.f32 0.0, %v577
  %v579 = vpop.f32.mrf.mxu0
  %v580 = vpop.f32.mrf.mxu0
  %581 = vdwg.mxu0
  %v582 = vadd.f32 %v535, %v537
  %v583 = vadd.f32 %v582, %v576
  %v584 = vadd.f32 %v583, %v578
  %585 = vadd.xlane.f32.xlu0 %v584
  %v586 = vpop.xlane.xlu0 %585
  %v587 = vmul.f32 %v586, 0.001953125
  %v588 = vmul.f32 %v535, %v535
  %v589 = vmul.f32 %v537, %v537
  %v590 = vmul.f32 %v576, %v576
  %v591 = vmul.f32 %v578, %v578
  %v592 = vadd.f32 %v588, %v589
  %v593 = vadd.f32 %v592, %v590
  %v594 = vadd.f32 %v593, %v591
  %595 = vadd.xlane.f32.xlu0 %v594
  %v596 = vpop.xlane.xlu0 %595
  %v597 = vmul.f32 %v596, 0.001953125
  %v598 = vmul.f32 %v587, %v587
  %v599 = vsub.f32 %v597, %v598
  %v600 = vmax.f32 %v599, 0.0
  %v601 = vld [vmem:[%s4] sm:$0xff]
  %v602 = vadd.f32 %v600, 1e-05
  %v603 = vrsqrt.pop %v602
  %v604 = vmul.f32 %v601, %v603
  %v605 = vld [vmem:[%s5] sm:$0xff]
  %v606 = vmul.f32 %v587, %v604
  %v607 = vsub.f32 %v605, %v606
  %609 = vset.pattern.permute.xlu0 0
  %610 = vperm.xlu0 %609, %v604
  %v611 = vpop.permute.xlu0 %610
  %v613 = vmul.f32 %v535, %v611
  %v614 = vmul.f32 %v537, %v611
  %v615 = vmul.f32 %v576, %v611
  %v616 = vmul.f32 %v578, %v611
  %618 = vset.pattern.permute.xlu0 0
  %619 = vperm.xlu0 %618, %v607
  %v620 = vpop.permute.xlu0 %619
  %v622 = vadd.f32 %v613, %v620
  %v623 = vadd.f32 %v614, %v620
  %v624 = vadd.f32 %v615, %v620
  %v625 = vadd.f32 %v616, %v620
  %v626 = vmax.f32 %v622, 0.0
  %v627 = vmax.f32 %v623, 0.0
  %v628 = vmax.f32 %v624, 0.0
  %v629 = vmax.f32 %v625, 0.0
  %v630 = vld [vmem:[%s2] sm:$0xf]
  %631 = vrot.lane.b32.xlu0 %v626, 34
  %v632 = vpop.permute.xlu0 %631
  %633 = vrot.lane.b32.xlu0 %v627, 34
  %v634 = vpop.permute.xlu0 %633
  %635 = vrot.lane.b32.xlu0 %v628, 34
  %v636 = vpop.permute.xlu0 %635
  %637 = vrot.lane.b32.xlu0 %v629, 34
  %v638 = vpop.permute.xlu0 %637
  %vm639 = vcmp.lt.s32.totalorder %v51, 34
  %v640 = vsel %vm639, %v636, %v638
  %v641 = vsel %vm639, %v634, %v636
  %v642 = vsel %vm639, %v632, %v634
  %v643 = vsel %vm639, %v638, %v632
  %vm644 = vcmp.ge.s32.totalorder %v30, 2
  %vm645 = vcmp.lt.s32.totalorder %v30, 18
  %vm646 = vmand %vm644, %vm645
  %vm647 = vcmp.ge.s32.totalorder %v31, 2
  %vm648 = vmand %vm646, %vm647
  %vm649 = vcmp.lt.s32.totalorder %v31, 18
  %vm650 = vmand %vm648, %vm649
  %v651 = vsel %vm650, 1, 0
  %v652 = vlaneseq
  %v653 = vshrl.u32 %v652, 7
  %v654 = vsub.s32 0, %v653
  %v655 = vrot.slane %v651, %v654
  %v656 = vlaneseq
  %v657 = vshrl.u32 %v656, 7
  %v658 = vsub.s32 1, %v657
  %v659 = vrot.slane %v651, %v658
  %v660 = vlaneseq
  %v661 = vshrl.u32 %v660, 7
  %v662 = vsub.s32 2, %v661
  %v663 = vrot.slane %v651, %v662
  %v664 = vlaneseq
  %v665 = vshrl.u32 %v664, 7
  %v666 = vsub.s32 3, %v665
  %v667 = vrot.slane %v651, %v666
  %vm668 = vcmp.eq.s32.totalorder %v655, 1
  %vm669 = vcmp.eq.s32.totalorder %v659, 1
  %vm670 = vcmp.eq.s32.totalorder %v663, 1
  %vm671 = vcmp.eq.s32.totalorder %v667, 1
  %v672 = vsel %vm668, %v643, 0.0
  %v673 = vsel %vm669, %v642, 0.0
  %v674 = vsel %vm670, %v641, 0.0
  %v675 = vsel %vm671, %v640, 0.0
  %676 = vrot.lane.b32.xlu0 %v626, 32
  %v677 = vpop.permute.xlu0 %676
  %678 = vrot.lane.b32.xlu0 %v627, 32
  %v679 = vpop.permute.xlu0 %678
  %680 = vrot.lane.b32.xlu0 %v628, 32
  %v681 = vpop.permute.xlu0 %680
  %682 = vrot.lane.b32.xlu0 %v629, 32
  %v683 = vpop.permute.xlu0 %682
  %vm684 = vcmp.lt.s32.totalorder %v51, 32
  %v685 = vsel %vm684, %v681, %v683
  %v686 = vsel %vm684, %v679, %v681
  %v687 = vsel %vm684, %v677, %v679
  %v688 = vsel %vm684, %v683, %v677
  %vm689 = vmand %vm646, %vm102
  %vm690 = vmand %vm689, %vm104
  %v691 = vsel %vm690, 1, 0
  %v692 = vlaneseq
  %v693 = vshrl.u32 %v692, 7
  %v694 = vsub.s32 0, %v693
  %v695 = vrot.slane %v691, %v694
  %v696 = vlaneseq
  %v697 = vshrl.u32 %v696, 7
  %v698 = vsub.s32 1, %v697
  %v699 = vrot.slane %v691, %v698
  %v700 = vlaneseq
  %v701 = vshrl.u32 %v700, 7
  %v702 = vsub.s32 2, %v701
  %v703 = vrot.slane %v691, %v702
  %v704 = vlaneseq
  %v705 = vshrl.u32 %v704, 7
  %v706 = vsub.s32 3, %v705
  %v707 = vrot.slane %v691, %v706
  %vm708 = vcmp.eq.s32.totalorder %v695, 1
  %vm709 = vcmp.eq.s32.totalorder %v699, 1
  %vm710 = vcmp.eq.s32.totalorder %v703, 1
  %vm711 = vcmp.eq.s32.totalorder %v707, 1
  %v712 = vsel %vm708, %v688, 0.0
  %v713 = vsel %vm709, %v687, 0.0
  %v714 = vsel %vm710, %v686, 0.0
  %v715 = vsel %vm711, %v685, 0.0
  %716 = vrot.lane.b32.xlu0 %v626, 30
  %v717 = vpop.permute.xlu0 %716
  %718 = vrot.lane.b32.xlu0 %v627, 30
  %v719 = vpop.permute.xlu0 %718
  %720 = vrot.lane.b32.xlu0 %v628, 30
  %v721 = vpop.permute.xlu0 %720
  %722 = vrot.lane.b32.xlu0 %v629, 30
  %v723 = vpop.permute.xlu0 %722
  %vm724 = vcmp.lt.s32.totalorder %v51, 30
  %v725 = vsel %vm724, %v721, %v723
  %v726 = vsel %vm724, %v719, %v721
  %v727 = vsel %vm724, %v717, %v719
  %v728 = vsel %vm724, %v723, %v717
  %vm729 = vcmp.ge.s32.totalorder %v31, 4294967294
  %vm730 = vmand %vm646, %vm729
  %vm731 = vcmp.lt.s32.totalorder %v31, 14
  %vm732 = vmand %vm730, %vm731
  %v733 = vsel %vm732, 1, 0
  %v734 = vlaneseq
  %v735 = vshrl.u32 %v734, 7
  %v736 = vsub.s32 0, %v735
  %v737 = vrot.slane %v733, %v736
  %v738 = vlaneseq
  %v739 = vshrl.u32 %v738, 7
  %v740 = vsub.s32 1, %v739
  %v741 = vrot.slane %v733, %v740
  %v742 = vlaneseq
  %v743 = vshrl.u32 %v742, 7
  %v744 = vsub.s32 2, %v743
  %v745 = vrot.slane %v733, %v744
  %v746 = vlaneseq
  %v747 = vshrl.u32 %v746, 7
  %v748 = vsub.s32 3, %v747
  %v749 = vrot.slane %v733, %v748
  %vm750 = vcmp.eq.s32.totalorder %v737, 1
  %vm751 = vcmp.eq.s32.totalorder %v741, 1
  %vm752 = vcmp.eq.s32.totalorder %v745, 1
  %vm753 = vcmp.eq.s32.totalorder %v749, 1
  %v754 = vsel %vm750, %v728, 0.0
  %v755 = vsel %vm751, %v727, 0.0
  %v756 = vsel %vm752, %v726, 0.0
  %v757 = vsel %vm753, %v725, 0.0
  %758 = vrot.lane.b32.xlu0 %v626, 2
  %v759 = vpop.permute.xlu0 %758
  %760 = vrot.lane.b32.xlu0 %v627, 2
  %v761 = vpop.permute.xlu0 %760
  %762 = vrot.lane.b32.xlu0 %v628, 2
  %v763 = vpop.permute.xlu0 %762
  %764 = vrot.lane.b32.xlu0 %v629, 2
  %v765 = vpop.permute.xlu0 %764
  %vm766 = vcmp.lt.s32.totalorder %v51, 2
  %v767 = vsel %vm766, %v763, %v765
  %v768 = vsel %vm766, %v761, %v763
  %v769 = vsel %vm766, %v759, %v761
  %v770 = vsel %vm766, %v765, %v759
  %vm771 = vmand %vm188, %vm647
  %vm772 = vmand %vm771, %vm649
  %v773 = vsel %vm772, 1, 0
  %v774 = vlaneseq
  %v775 = vshrl.u32 %v774, 7
  %v776 = vsub.s32 0, %v775
  %v777 = vrot.slane %v773, %v776
  %v778 = vlaneseq
  %v779 = vshrl.u32 %v778, 7
  %v780 = vsub.s32 1, %v779
  %v781 = vrot.slane %v773, %v780
  %v782 = vlaneseq
  %v783 = vshrl.u32 %v782, 7
  %v784 = vsub.s32 2, %v783
  %v785 = vrot.slane %v773, %v784
  %v786 = vlaneseq
  %v787 = vshrl.u32 %v786, 7
  %v788 = vsub.s32 3, %v787
  %v789 = vrot.slane %v773, %v788
  %vm790 = vcmp.eq.s32.totalorder %v777, 1
  %vm791 = vcmp.eq.s32.totalorder %v781, 1
  %vm792 = vcmp.eq.s32.totalorder %v785, 1
  %vm793 = vcmp.eq.s32.totalorder %v789, 1
  %v794 = vsel %vm790, %v770, 0.0
  %v795 = vsel %vm791, %v769, 0.0
  %v796 = vsel %vm792, %v768, 0.0
  %v797 = vsel %vm793, %v767, 0.0
  %v798 = vsel %vm235, %v626, 0.0
  %v799 = vsel %vm236, %v627, 0.0
  %v800 = vsel %vm237, %v628, 0.0
  %v801 = vsel %vm238, %v629, 0.0
  %802 = vrot.lane.b32.xlu0 %v626, 126
  %v803 = vpop.permute.xlu0 %802
  %804 = vrot.lane.b32.xlu0 %v627, 126
  %v805 = vpop.permute.xlu0 %804
  %806 = vrot.lane.b32.xlu0 %v628, 126
  %v807 = vpop.permute.xlu0 %806
  %808 = vrot.lane.b32.xlu0 %v629, 126
  %v809 = vpop.permute.xlu0 %808
  %vm810 = vcmp.lt.s32.totalorder %v51, 126
  %v811 = vsel %vm810, %v807, %v809
  %v812 = vsel %vm810, %v805, %v807
  %v813 = vsel %vm810, %v803, %v805
  %v814 = vsel %vm810, %v809, %v803
  %vm815 = vmand %vm188, %vm729
  %vm816 = vmand %vm815, %vm731
  %v817 = vsel %vm816, 1, 0
  %v818 = vlaneseq
  %v819 = vshrl.u32 %v818, 7
  %v820 = vsub.s32 0, %v819
  %v821 = vrot.slane %v817, %v820
  %v822 = vlaneseq
  %v823 = vshrl.u32 %v822, 7
  %v824 = vsub.s32 1, %v823
  %v825 = vrot.slane %v817, %v824
  %v826 = vlaneseq
  %v827 = vshrl.u32 %v826, 7
  %v828 = vsub.s32 2, %v827
  %v829 = vrot.slane %v817, %v828
  %v830 = vlaneseq
  %v831 = vshrl.u32 %v830, 7
  %v832 = vsub.s32 3, %v831
  %v833 = vrot.slane %v817, %v832
  %vm834 = vcmp.eq.s32.totalorder %v821, 1
  %vm835 = vcmp.eq.s32.totalorder %v825, 1
  %vm836 = vcmp.eq.s32.totalorder %v829, 1
  %vm837 = vcmp.eq.s32.totalorder %v833, 1
  %v838 = vsel %vm834, %v813, 0.0
  %v839 = vsel %vm835, %v812, 0.0
  %v840 = vsel %vm836, %v811, 0.0
  %v841 = vsel %vm837, %v814, 0.0
  %842 = vrot.lane.b32.xlu0 %v626, 98
  %v843 = vpop.permute.xlu0 %842
  %844 = vrot.lane.b32.xlu0 %v627, 98
  %v845 = vpop.permute.xlu0 %844
  %846 = vrot.lane.b32.xlu0 %v628, 98
  %v847 = vpop.permute.xlu0 %846
  %848 = vrot.lane.b32.xlu0 %v629, 98
  %v849 = vpop.permute.xlu0 %848
  %vm850 = vcmp.lt.s32.totalorder %v51, 98
  %v851 = vsel %vm850, %v847, %v849
  %v852 = vsel %vm850, %v845, %v847
  %v853 = vsel %vm850, %v843, %v845
  %v854 = vsel %vm850, %v849, %v843
  %vm855 = vcmp.ge.s32.totalorder %v30, 4294967294
  %vm856 = vcmp.lt.s32.totalorder %v30, 14
  %vm857 = vmand %vm855, %vm856
  %vm858 = vmand %vm857, %vm647
  %vm859 = vmand %vm858, %vm649
  %v860 = vsel %vm859, 1, 0
  %v861 = vlaneseq
  %v862 = vshrl.u32 %v861, 7
  %v863 = vsub.s32 0, %v862
  %v864 = vrot.slane %v860, %v863
  %v865 = vlaneseq
  %v866 = vshrl.u32 %v865, 7
  %v867 = vsub.s32 1, %v866
  %v868 = vrot.slane %v860, %v867
  %v869 = vlaneseq
  %v870 = vshrl.u32 %v869, 7
  %v871 = vsub.s32 2, %v870
  %v872 = vrot.slane %v860, %v871
  %v873 = vlaneseq
  %v874 = vshrl.u32 %v873, 7
  %v875 = vsub.s32 3, %v874
  %v876 = vrot.slane %v860, %v875
  %vm877 = vcmp.eq.s32.totalorder %v864, 1
  %vm878 = vcmp.eq.s32.totalorder %v868, 1
  %vm879 = vcmp.eq.s32.totalorder %v872, 1
  %vm880 = vcmp.eq.s32.totalorder %v876, 1
  %v881 = vsel %vm877, %v853, 0.0
  %v882 = vsel %vm878, %v852, 0.0
  %v883 = vsel %vm879, %v851, 0.0
  %v884 = vsel %vm880, %v854, 0.0
  %885 = vrot.lane.b32.xlu0 %v626, 96
  %v886 = vpop.permute.xlu0 %885
  %887 = vrot.lane.b32.xlu0 %v627, 96
  %v888 = vpop.permute.xlu0 %887
  %889 = vrot.lane.b32.xlu0 %v628, 96
  %v890 = vpop.permute.xlu0 %889
  %891 = vrot.lane.b32.xlu0 %v629, 96
  %v892 = vpop.permute.xlu0 %891
  %vm893 = vcmp.lt.s32.totalorder %v51, 96
  %v894 = vsel %vm893, %v890, %v892
  %v895 = vsel %vm893, %v888, %v890
  %v896 = vsel %vm893, %v886, %v888
  %v897 = vsel %vm893, %v892, %v886
  %vm898 = vmand %vm857, %vm102
  %vm899 = vmand %vm898, %vm104
  %v900 = vsel %vm899, 1, 0
  %v901 = vlaneseq
  %v902 = vshrl.u32 %v901, 7
  %v903 = vsub.s32 0, %v902
  %v904 = vrot.slane %v900, %v903
  %v905 = vlaneseq
  %v906 = vshrl.u32 %v905, 7
  %v907 = vsub.s32 1, %v906
  %v908 = vrot.slane %v900, %v907
  %v909 = vlaneseq
  %v910 = vshrl.u32 %v909, 7
  %v911 = vsub.s32 2, %v910
  %v912 = vrot.slane %v900, %v911
  %v913 = vlaneseq
  %v914 = vshrl.u32 %v913, 7
  %v915 = vsub.s32 3, %v914
  %v916 = vrot.slane %v900, %v915
  %vm917 = vcmp.eq.s32.totalorder %v904, 1
  %vm918 = vcmp.eq.s32.totalorder %v908, 1
  %vm919 = vcmp.eq.s32.totalorder %v912, 1
  %vm920 = vcmp.eq.s32.totalorder %v916, 1
  %v921 = vsel %vm917, %v896, 0.0
  %v922 = vsel %vm918, %v895, 0.0
  %v923 = vsel %vm919, %v894, 0.0
  %v924 = vsel %vm920, %v897, 0.0
  %925 = vrot.lane.b32.xlu0 %v626, 94
  %v926 = vpop.permute.xlu0 %925
  %927 = vrot.lane.b32.xlu0 %v627, 94
  %v928 = vpop.permute.xlu0 %927
  %929 = vrot.lane.b32.xlu0 %v628, 94
  %v930 = vpop.permute.xlu0 %929
  %931 = vrot.lane.b32.xlu0 %v629, 94
  %v932 = vpop.permute.xlu0 %931
  %vm933 = vcmp.lt.s32.totalorder %v51, 94
  %v934 = vsel %vm933, %v930, %v932
  %v935 = vsel %vm933, %v928, %v930
  %v936 = vsel %vm933, %v926, %v928
  %v937 = vsel %vm933, %v932, %v926
  %vm938 = vmand %vm857, %vm729
  %vm939 = vmand %vm938, %vm731
  %v940 = vsel %vm939, 1, 0
  %v941 = vlaneseq
  %v942 = vshrl.u32 %v941, 7
  %v943 = vsub.s32 0, %v942
  %v944 = vrot.slane %v940, %v943
  %v945 = vlaneseq
  %v946 = vshrl.u32 %v945, 7
  %v947 = vsub.s32 1, %v946
  %v948 = vrot.slane %v940, %v947
  %v949 = vlaneseq
  %v950 = vshrl.u32 %v949, 7
  %v951 = vsub.s32 2, %v950
  %v952 = vrot.slane %v940, %v951
  %v953 = vlaneseq
  %v954 = vshrl.u32 %v953, 7
  %v955 = vsub.s32 3, %v954
  %v956 = vrot.slane %v940, %v955
  %vm957 = vcmp.eq.s32.totalorder %v944, 1
  %vm958 = vcmp.eq.s32.totalorder %v948, 1
  %vm959 = vcmp.eq.s32.totalorder %v952, 1
  %vm960 = vcmp.eq.s32.totalorder %v956, 1
  %v961 = vsel %vm957, %v936, 0.0
  %v962 = vsel %vm958, %v935, 0.0
  %v963 = vsel %vm959, %v934, 0.0
  %v964 = vsel %vm960, %v937, 0.0
  %v965 = vpack.c.bf16 %v712, %v672
  %v966 = vpack.c.bf16 %v713, %v673
  %v967 = vpack.c.bf16 %v714, %v674
  %v968 = vpack.c.bf16 %v715, %v675
  %v969 = vpack.c.bf16 %v794, %v754
  %v970 = vpack.c.bf16 %v795, %v755
  %v971 = vpack.c.bf16 %v796, %v756
  %v972 = vpack.c.bf16 %v797, %v757
  %v973 = vpack.c.bf16 %v838, %v798
  %v974 = vpack.c.bf16 %v839, %v799
  %v975 = vpack.c.bf16 %v840, %v800
  %v976 = vpack.c.bf16 %v841, %v801
  %v977 = vpack.c.bf16 %v921, %v881
  %v978 = vpack.c.bf16 %v922, %v882
  %v979 = vpack.c.bf16 %v923, %v883
  %v980 = vpack.c.bf16 %v924, %v884
  %v981 = vpack.c.bf16 %v961, %v961
  %v982 = vpack.c.bf16 %v962, %v962
  %v983 = vpack.c.bf16 %v963, %v963
  %v984 = vpack.c.bf16 %v964, %v964
  %vm985 = vcmask 588800
  %v987 = vsel %vm985, %v630, 0
  %v990 = vsel %vm454, %v981, 0
  %v993 = vsel %vm454, %v982, 0
  %v996 = vsel %vm454, %v983, 0
  %v999 = vsel %vm454, %v984, 0
  %1001 = vmatprep.subr.bf16.mxu0 0
  %1002 = vmatpush1.bf16.msra.mxu0 0
  %1003 = vmatprep.subr.bf16.mxu0 0
  %1004 = vmatpush1.bf16.msra.mxu0 0
  %1005 = vmatprep.subr.bf16.mxu0 0
  %1006 = vmatpush1.bf16.msra.mxu0 0
  %1007 = vmatprep.subr.bf16.mxu0 %v993
  %1008 = vmatpush1.bf16.msra.mxu0 %v990
  %1009 = vmatprep.subr.bf16.mxu0 %v978
  %1010 = vmatpush1.bf16.msra.mxu0 %v977
  %1011 = vmatprep.subr.bf16.mxu0 %v974
  %1012 = vmatpush1.bf16.msra.mxu0 %v973
  %1013 = vmatprep.subr.bf16.mxu0 %v970
  %1014 = vmatpush1.bf16.msra.mxu0 %v969
  %1015 = vmatprep.subr.bf16.mxu0 %v966
  %1016 = vmatpush1.bf16.msra.mxu0 %v965
  %1017 = vmatprep.subr.bf16.mxu0 0
  %1018 = vmatpush2.bf16.msra.mxu0 0
  %1019 = vmatprep.subr.bf16.mxu0 0
  %1020 = vmatpush2.bf16.msra.mxu0 0
  %1021 = vmatprep.subr.bf16.mxu0 0
  %1022 = vmatpush2.bf16.msra.mxu0 0
  %1023 = vmatprep.subr.bf16.mxu0 0
  %1024 = vmatpush2.bf16.msra.mxu0 0
  %1025 = vmatprep.subr.bf16.mxu0 0
  %1026 = vmatpush2.bf16.msra.mxu0 0
  %1027 = vmatprep.subr.bf16.mxu0 0
  %1028 = vmatpush2.bf16.msra.mxu0 0
  %1029 = vmatprep.subr.bf16.mxu0 0
  %1030 = vmatpush2.bf16.msra.mxu0 0
  %1031 = vmatprep.subr.bf16.mxu0 0
  %1032 = vmatpush2.bf16.msra.mxu0 0
  %1033 = vmatprep.mubr.bf16.mxu0 0
  %1034 = vmatmul.mubr.bf16.gmra.mxu0 %v987
  %v1035 = vpop.f32.mrf.mxu0
  %v1036 = vadd.f32 0.0, %v1035
  %v1037 = vpop.f32.mrf.mxu0
  %v1038 = vadd.f32 0.0, %v1037
  %v1039 = vpop.f32.mrf.mxu0
  %v1040 = vpop.f32.mrf.mxu0
  %1041 = vdwg.mxu0
  %1042 = vmatprep.subr.bf16.mxu0 0
  %1043 = vmatpush1.bf16.msra.mxu0 0
  %1044 = vmatprep.subr.bf16.mxu0 0
  %1045 = vmatpush1.bf16.msra.mxu0 0
  %1046 = vmatprep.subr.bf16.mxu0 0
  %1047 = vmatpush1.bf16.msra.mxu0 0
  %1048 = vmatprep.subr.bf16.mxu0 %v999
  %1049 = vmatpush1.bf16.msra.mxu0 %v996
  %1050 = vmatprep.subr.bf16.mxu0 %v980
  %1051 = vmatpush1.bf16.msra.mxu0 %v979
  %1052 = vmatprep.subr.bf16.mxu0 %v976
  %1053 = vmatpush1.bf16.msra.mxu0 %v975
  %1054 = vmatprep.subr.bf16.mxu0 %v972
  %1055 = vmatpush1.bf16.msra.mxu0 %v971
  %1056 = vmatprep.subr.bf16.mxu0 %v968
  %1057 = vmatpush1.bf16.msra.mxu0 %v967
  %1058 = vmatprep.subr.bf16.mxu0 0
  %1059 = vmatpush2.bf16.msra.mxu0 0
  %1060 = vmatprep.subr.bf16.mxu0 0
  %1061 = vmatpush2.bf16.msra.mxu0 0
  %1062 = vmatprep.subr.bf16.mxu0 0
  %1063 = vmatpush2.bf16.msra.mxu0 0
  %1064 = vmatprep.subr.bf16.mxu0 0
  %1065 = vmatpush2.bf16.msra.mxu0 0
  %1066 = vmatprep.subr.bf16.mxu0 0
  %1067 = vmatpush2.bf16.msra.mxu0 0
  %1068 = vmatprep.subr.bf16.mxu0 0
  %1069 = vmatpush2.bf16.msra.mxu0 0
  %1070 = vmatprep.subr.bf16.mxu0 0
  %1071 = vmatpush2.bf16.msra.mxu0 0
  %1072 = vmatprep.subr.bf16.mxu0 0
  %1073 = vmatpush2.bf16.msra.mxu0 0
  %1074 = vmatprep.mubr.bf16.mxu0 0
  %1075 = vmatmul.mubr.bf16.gmra.mxu0 %v987
  %v1076 = vpop.f32.mrf.mxu0
  %v1077 = vadd.f32 0.0, %v1076
  %v1078 = vpop.f32.mrf.mxu0
  %v1079 = vadd.f32 0.0, %v1078
  %v1080 = vpop.f32.mrf.mxu0
  %v1081 = vpop.f32.mrf.mxu0
  %1082 = vdwg.mxu0
  %v1083 = vadd.f32 %v1036, %v1038
  %v1084 = vadd.f32 %v1083, %v1077
  %v1085 = vadd.f32 %v1084, %v1079
  %1086 = vadd.xlane.f32.xlu0 %v1085
  %v1087 = vpop.xlane.xlu0 %1086
  %v1088 = vmul.f32 %v1087, 0.001953125
  %v1089 = vmul.f32 %v1036, %v1036
  %v1090 = vmul.f32 %v1038, %v1038
  %v1091 = vmul.f32 %v1077, %v1077
  %v1092 = vmul.f32 %v1079, %v1079
  %v1093 = vadd.f32 %v1089, %v1090
  %v1094 = vadd.f32 %v1093, %v1091
  %v1095 = vadd.f32 %v1094, %v1092
  %1096 = vadd.xlane.f32.xlu0 %v1095
  %v1097 = vpop.xlane.xlu0 %1096
  %v1098 = vmul.f32 %v1097, 0.001953125
  %v1099 = vmul.f32 %v1088, %v1088
  %v1100 = vsub.f32 %v1098, %v1099
  %v1101 = vmax.f32 %v1100, 0.0
  %v1102 = vadd.f32 %v1101, 1e-05
  %v1103 = vrsqrt.pop %v1102
  %v1104 = vmul.f32 %v601, %v1103
  %v1105 = vmul.f32 %v1088, %v1104
  %v1106 = vsub.f32 %v605, %v1105
  %1108 = vset.pattern.permute.xlu0 1
  %1109 = vperm.xlu0 %1108, %v1104
  %v1110 = vpop.permute.xlu0 %1109
  %v1112 = vmul.f32 %v1036, %v1110
  %v1113 = vmul.f32 %v1038, %v1110
  %v1114 = vmul.f32 %v1077, %v1110
  %v1115 = vmul.f32 %v1079, %v1110
  %1117 = vset.pattern.permute.xlu0 1
  %1118 = vperm.xlu0 %1117, %v1106
  %v1119 = vpop.permute.xlu0 %1118
  %v1121 = vadd.f32 %v1112, %v1119
  %v1122 = vadd.f32 %v1113, %v1119
  %v1123 = vadd.f32 %v1114, %v1119
  %v1124 = vadd.f32 %v1115, %v1119
  %v1125 = vmax.f32 %v1121, 0.0
  %v1126 = vmax.f32 %v1122, 0.0
  %v1127 = vmax.f32 %v1123, 0.0
  %v1128 = vmax.f32 %v1124, 0.0
  %v1129 = vld [vmem:[%s3] sm:$0xf]
  %1130 = vrot.lane.b32.xlu0 %v1125, 51
  %v1131 = vpop.permute.xlu0 %1130
  %1132 = vrot.lane.b32.xlu0 %v1126, 51
  %v1133 = vpop.permute.xlu0 %1132
  %1134 = vrot.lane.b32.xlu0 %v1127, 51
  %v1135 = vpop.permute.xlu0 %1134
  %1136 = vrot.lane.b32.xlu0 %v1128, 51
  %v1137 = vpop.permute.xlu0 %1136
  %vm1138 = vcmp.lt.s32.totalorder %v51, 51
  %v1139 = vsel %vm1138, %v1135, %v1137
  %v1140 = vsel %vm1138, %v1133, %v1135
  %v1141 = vsel %vm1138, %v1131, %v1133
  %v1142 = vsel %vm1138, %v1137, %v1131
  %vm1143 = vcmp.ge.s32.totalorder %v30, 3
  %vm1144 = vcmp.lt.s32.totalorder %v30, 19
  %vm1145 = vmand %vm1143, %vm1144
  %vm1146 = vcmp.ge.s32.totalorder %v31, 3
  %vm1147 = vmand %vm1145, %vm1146
  %vm1148 = vcmp.lt.s32.totalorder %v31, 19
  %vm1149 = vmand %vm1147, %vm1148
  %v1150 = vsel %vm1149, 1, 0
  %v1151 = vlaneseq
  %v1152 = vshrl.u32 %v1151, 7
  %v1153 = vsub.s32 0, %v1152
  %v1154 = vrot.slane %v1150, %v1153
  %v1155 = vlaneseq
  %v1156 = vshrl.u32 %v1155, 7
  %v1157 = vsub.s32 1, %v1156
  %v1158 = vrot.slane %v1150, %v1157
  %v1159 = vlaneseq
  %v1160 = vshrl.u32 %v1159, 7
  %v1161 = vsub.s32 2, %v1160
  %v1162 = vrot.slane %v1150, %v1161
  %v1163 = vlaneseq
  %v1164 = vshrl.u32 %v1163, 7
  %v1165 = vsub.s32 3, %v1164
  %v1166 = vrot.slane %v1150, %v1165
  %vm1167 = vcmp.eq.s32.totalorder %v1154, 1
  %vm1168 = vcmp.eq.s32.totalorder %v1158, 1
  %vm1169 = vcmp.eq.s32.totalorder %v1162, 1
  %vm1170 = vcmp.eq.s32.totalorder %v1166, 1
  %v1171 = vsel %vm1167, %v1142, 0.0
  %v1172 = vsel %vm1168, %v1141, 0.0
  %v1173 = vsel %vm1169, %v1140, 0.0
  %v1174 = vsel %vm1170, %v1139, 0.0
  %1175 = vrot.lane.b32.xlu0 %v1125, 48
  %v1176 = vpop.permute.xlu0 %1175
  %1177 = vrot.lane.b32.xlu0 %v1126, 48
  %v1178 = vpop.permute.xlu0 %1177
  %1179 = vrot.lane.b32.xlu0 %v1127, 48
  %v1180 = vpop.permute.xlu0 %1179
  %1181 = vrot.lane.b32.xlu0 %v1128, 48
  %v1182 = vpop.permute.xlu0 %1181
  %vm1183 = vcmp.lt.s32.totalorder %v51, 48
  %v1184 = vsel %vm1183, %v1180, %v1182
  %v1185 = vsel %vm1183, %v1178, %v1180
  %v1186 = vsel %vm1183, %v1176, %v1178
  %v1187 = vsel %vm1183, %v1182, %v1176
  %vm1188 = vmand %vm1145, %vm102
  %vm1189 = vmand %vm1188, %vm104
  %v1190 = vsel %vm1189, 1, 0
  %v1191 = vlaneseq
  %v1192 = vshrl.u32 %v1191, 7
  %v1193 = vsub.s32 0, %v1192
  %v1194 = vrot.slane %v1190, %v1193
  %v1195 = vlaneseq
  %v1196 = vshrl.u32 %v1195, 7
  %v1197 = vsub.s32 1, %v1196
  %v1198 = vrot.slane %v1190, %v1197
  %v1199 = vlaneseq
  %v1200 = vshrl.u32 %v1199, 7
  %v1201 = vsub.s32 2, %v1200
  %v1202 = vrot.slane %v1190, %v1201
  %v1203 = vlaneseq
  %v1204 = vshrl.u32 %v1203, 7
  %v1205 = vsub.s32 3, %v1204
  %v1206 = vrot.slane %v1190, %v1205
  %vm1207 = vcmp.eq.s32.totalorder %v1194, 1
  %vm1208 = vcmp.eq.s32.totalorder %v1198, 1
  %vm1209 = vcmp.eq.s32.totalorder %v1202, 1
  %vm1210 = vcmp.eq.s32.totalorder %v1206, 1
  %v1211 = vsel %vm1207, %v1187, 0.0
  %v1212 = vsel %vm1208, %v1186, 0.0
  %v1213 = vsel %vm1209, %v1185, 0.0
  %v1214 = vsel %vm1210, %v1184, 0.0
  %1215 = vrot.lane.b32.xlu0 %v1125, 45
  %v1216 = vpop.permute.xlu0 %1215
  %1217 = vrot.lane.b32.xlu0 %v1126, 45
  %v1218 = vpop.permute.xlu0 %1217
  %1219 = vrot.lane.b32.xlu0 %v1127, 45
  %v1220 = vpop.permute.xlu0 %1219
  %1221 = vrot.lane.b32.xlu0 %v1128, 45
  %v1222 = vpop.permute.xlu0 %1221
  %vm1223 = vcmp.lt.s32.totalorder %v51, 45
  %v1224 = vsel %vm1223, %v1220, %v1222
  %v1225 = vsel %vm1223, %v1218, %v1220
  %v1226 = vsel %vm1223, %v1216, %v1218
  %v1227 = vsel %vm1223, %v1222, %v1216
  %vm1228 = vcmp.ge.s32.totalorder %v31, 4294967293
  %vm1229 = vmand %vm1145, %vm1228
  %vm1230 = vcmp.lt.s32.totalorder %v31, 13
  %vm1231 = vmand %vm1229, %vm1230
  %v1232 = vsel %vm1231, 1, 0
  %v1233 = vlaneseq
  %v1234 = vshrl.u32 %v1233, 7
  %v1235 = vsub.s32 0, %v1234
  %v1236 = vrot.slane %v1232, %v1235
  %v1237 = vlaneseq
  %v1238 = vshrl.u32 %v1237, 7
  %v1239 = vsub.s32 1, %v1238
  %v1240 = vrot.slane %v1232, %v1239
  %v1241 = vlaneseq
  %v1242 = vshrl.u32 %v1241, 7
  %v1243 = vsub.s32 2, %v1242
  %v1244 = vrot.slane %v1232, %v1243
  %v1245 = vlaneseq
  %v1246 = vshrl.u32 %v1245, 7
  %v1247 = vsub.s32 3, %v1246
  %v1248 = vrot.slane %v1232, %v1247
  %vm1249 = vcmp.eq.s32.totalorder %v1236, 1
  %vm1250 = vcmp.eq.s32.totalorder %v1240, 1
  %vm1251 = vcmp.eq.s32.totalorder %v1244, 1
  %vm1252 = vcmp.eq.s32.totalorder %v1248, 1
  %v1253 = vsel %vm1249, %v1227, 0.0
  %v1254 = vsel %vm1250, %v1226, 0.0
  %v1255 = vsel %vm1251, %v1225, 0.0
  %v1256 = vsel %vm1252, %v1224, 0.0
  %1257 = vrot.lane.b32.xlu0 %v1125, 3
  %v1258 = vpop.permute.xlu0 %1257
  %1259 = vrot.lane.b32.xlu0 %v1126, 3
  %v1260 = vpop.permute.xlu0 %1259
  %1261 = vrot.lane.b32.xlu0 %v1127, 3
  %v1262 = vpop.permute.xlu0 %1261
  %1263 = vrot.lane.b32.xlu0 %v1128, 3
  %v1264 = vpop.permute.xlu0 %1263
  %vm1265 = vcmp.lt.s32.totalorder %v51, 3
  %v1266 = vsel %vm1265, %v1262, %v1264
  %v1267 = vsel %vm1265, %v1260, %v1262
  %v1268 = vsel %vm1265, %v1258, %v1260
  %v1269 = vsel %vm1265, %v1264, %v1258
  %vm1270 = vmand %vm188, %vm1146
  %vm1271 = vmand %vm1270, %vm1148
  %v1272 = vsel %vm1271, 1, 0
  %v1273 = vlaneseq
  %v1274 = vshrl.u32 %v1273, 7
  %v1275 = vsub.s32 0, %v1274
  %v1276 = vrot.slane %v1272, %v1275
  %v1277 = vlaneseq
  %v1278 = vshrl.u32 %v1277, 7
  %v1279 = vsub.s32 1, %v1278
  %v1280 = vrot.slane %v1272, %v1279
  %v1281 = vlaneseq
  %v1282 = vshrl.u32 %v1281, 7
  %v1283 = vsub.s32 2, %v1282
  %v1284 = vrot.slane %v1272, %v1283
  %v1285 = vlaneseq
  %v1286 = vshrl.u32 %v1285, 7
  %v1287 = vsub.s32 3, %v1286
  %v1288 = vrot.slane %v1272, %v1287
  %vm1289 = vcmp.eq.s32.totalorder %v1276, 1
  %vm1290 = vcmp.eq.s32.totalorder %v1280, 1
  %vm1291 = vcmp.eq.s32.totalorder %v1284, 1
  %vm1292 = vcmp.eq.s32.totalorder %v1288, 1
  %v1293 = vsel %vm1289, %v1269, 0.0
  %v1294 = vsel %vm1290, %v1268, 0.0
  %v1295 = vsel %vm1291, %v1267, 0.0
  %v1296 = vsel %vm1292, %v1266, 0.0
  %v1297 = vsel %vm235, %v1125, 0.0
  %v1298 = vsel %vm236, %v1126, 0.0
  %v1299 = vsel %vm237, %v1127, 0.0
  %v1300 = vsel %vm238, %v1128, 0.0
  %1301 = vrot.lane.b32.xlu0 %v1125, 125
  %v1302 = vpop.permute.xlu0 %1301
  %1303 = vrot.lane.b32.xlu0 %v1126, 125
  %v1304 = vpop.permute.xlu0 %1303
  %1305 = vrot.lane.b32.xlu0 %v1127, 125
  %v1306 = vpop.permute.xlu0 %1305
  %1307 = vrot.lane.b32.xlu0 %v1128, 125
  %v1308 = vpop.permute.xlu0 %1307
  %vm1309 = vcmp.lt.s32.totalorder %v51, 125
  %v1310 = vsel %vm1309, %v1306, %v1308
  %v1311 = vsel %vm1309, %v1304, %v1306
  %v1312 = vsel %vm1309, %v1302, %v1304
  %v1313 = vsel %vm1309, %v1308, %v1302
  %vm1314 = vmand %vm188, %vm1228
  %vm1315 = vmand %vm1314, %vm1230
  %v1316 = vsel %vm1315, 1, 0
  %v1317 = vlaneseq
  %v1318 = vshrl.u32 %v1317, 7
  %v1319 = vsub.s32 0, %v1318
  %v1320 = vrot.slane %v1316, %v1319
  %v1321 = vlaneseq
  %v1322 = vshrl.u32 %v1321, 7
  %v1323 = vsub.s32 1, %v1322
  %v1324 = vrot.slane %v1316, %v1323
  %v1325 = vlaneseq
  %v1326 = vshrl.u32 %v1325, 7
  %v1327 = vsub.s32 2, %v1326
  %v1328 = vrot.slane %v1316, %v1327
  %v1329 = vlaneseq
  %v1330 = vshrl.u32 %v1329, 7
  %v1331 = vsub.s32 3, %v1330
  %v1332 = vrot.slane %v1316, %v1331
  %vm1333 = vcmp.eq.s32.totalorder %v1320, 1
  %vm1334 = vcmp.eq.s32.totalorder %v1324, 1
  %vm1335 = vcmp.eq.s32.totalorder %v1328, 1
  %vm1336 = vcmp.eq.s32.totalorder %v1332, 1
  %v1337 = vsel %vm1333, %v1312, 0.0
  %v1338 = vsel %vm1334, %v1311, 0.0
  %v1339 = vsel %vm1335, %v1310, 0.0
  %v1340 = vsel %vm1336, %v1313, 0.0
  %1341 = vrot.lane.b32.xlu0 %v1125, 83
  %v1342 = vpop.permute.xlu0 %1341
  %1343 = vrot.lane.b32.xlu0 %v1126, 83
  %v1344 = vpop.permute.xlu0 %1343
  %1345 = vrot.lane.b32.xlu0 %v1127, 83
  %v1346 = vpop.permute.xlu0 %1345
  %1347 = vrot.lane.b32.xlu0 %v1128, 83
  %v1348 = vpop.permute.xlu0 %1347
  %vm1349 = vcmp.lt.s32.totalorder %v51, 83
  %v1350 = vsel %vm1349, %v1346, %v1348
  %v1351 = vsel %vm1349, %v1344, %v1346
  %v1352 = vsel %vm1349, %v1342, %v1344
  %v1353 = vsel %vm1349, %v1348, %v1342
  %vm1354 = vcmp.ge.s32.totalorder %v30, 4294967293
  %vm1355 = vcmp.lt.s32.totalorder %v30, 13
  %vm1356 = vmand %vm1354, %vm1355
  %vm1357 = vmand %vm1356, %vm1146
  %vm1358 = vmand %vm1357, %vm1148
  %v1359 = vsel %vm1358, 1, 0
  %v1360 = vlaneseq
  %v1361 = vshrl.u32 %v1360, 7
  %v1362 = vsub.s32 0, %v1361
  %v1363 = vrot.slane %v1359, %v1362
  %v1364 = vlaneseq
  %v1365 = vshrl.u32 %v1364, 7
  %v1366 = vsub.s32 1, %v1365
  %v1367 = vrot.slane %v1359, %v1366
  %v1368 = vlaneseq
  %v1369 = vshrl.u32 %v1368, 7
  %v1370 = vsub.s32 2, %v1369
  %v1371 = vrot.slane %v1359, %v1370
  %v1372 = vlaneseq
  %v1373 = vshrl.u32 %v1372, 7
  %v1374 = vsub.s32 3, %v1373
  %v1375 = vrot.slane %v1359, %v1374
  %vm1376 = vcmp.eq.s32.totalorder %v1363, 1
  %vm1377 = vcmp.eq.s32.totalorder %v1367, 1
  %vm1378 = vcmp.eq.s32.totalorder %v1371, 1
  %vm1379 = vcmp.eq.s32.totalorder %v1375, 1
  %v1380 = vsel %vm1376, %v1352, 0.0
  %v1381 = vsel %vm1377, %v1351, 0.0
  %v1382 = vsel %vm1378, %v1350, 0.0
  %v1383 = vsel %vm1379, %v1353, 0.0
  %1384 = vrot.lane.b32.xlu0 %v1125, 80
  %v1385 = vpop.permute.xlu0 %1384
  %1386 = vrot.lane.b32.xlu0 %v1126, 80
  %v1387 = vpop.permute.xlu0 %1386
  %1388 = vrot.lane.b32.xlu0 %v1127, 80
  %v1389 = vpop.permute.xlu0 %1388
  %1390 = vrot.lane.b32.xlu0 %v1128, 80
  %v1391 = vpop.permute.xlu0 %1390
  %vm1392 = vcmp.lt.s32.totalorder %v51, 80
  %v1393 = vsel %vm1392, %v1389, %v1391
  %v1394 = vsel %vm1392, %v1387, %v1389
  %v1395 = vsel %vm1392, %v1385, %v1387
  %v1396 = vsel %vm1392, %v1391, %v1385
  %vm1397 = vmand %vm1356, %vm102
  %vm1398 = vmand %vm1397, %vm104
  %v1399 = vsel %vm1398, 1, 0
  %v1400 = vlaneseq
  %v1401 = vshrl.u32 %v1400, 7
  %v1402 = vsub.s32 0, %v1401
  %v1403 = vrot.slane %v1399, %v1402
  %v1404 = vlaneseq
  %v1405 = vshrl.u32 %v1404, 7
  %v1406 = vsub.s32 1, %v1405
  %v1407 = vrot.slane %v1399, %v1406
  %v1408 = vlaneseq
  %v1409 = vshrl.u32 %v1408, 7
  %v1410 = vsub.s32 2, %v1409
  %v1411 = vrot.slane %v1399, %v1410
  %v1412 = vlaneseq
  %v1413 = vshrl.u32 %v1412, 7
  %v1414 = vsub.s32 3, %v1413
  %v1415 = vrot.slane %v1399, %v1414
  %vm1416 = vcmp.eq.s32.totalorder %v1403, 1
  %vm1417 = vcmp.eq.s32.totalorder %v1407, 1
  %vm1418 = vcmp.eq.s32.totalorder %v1411, 1
  %vm1419 = vcmp.eq.s32.totalorder %v1415, 1
  %v1420 = vsel %vm1416, %v1395, 0.0
  %v1421 = vsel %vm1417, %v1394, 0.0
  %v1422 = vsel %vm1418, %v1393, 0.0
  %v1423 = vsel %vm1419, %v1396, 0.0
  %1424 = vrot.lane.b32.xlu0 %v1125, 77
  %v1425 = vpop.permute.xlu0 %1424
  %1426 = vrot.lane.b32.xlu0 %v1126, 77
  %v1427 = vpop.permute.xlu0 %1426
  %1428 = vrot.lane.b32.xlu0 %v1127, 77
  %v1429 = vpop.permute.xlu0 %1428
  %1430 = vrot.lane.b32.xlu0 %v1128, 77
  %v1431 = vpop.permute.xlu0 %1430
  %vm1432 = vcmp.lt.s32.totalorder %v51, 77
  %v1433 = vsel %vm1432, %v1429, %v1431
  %v1434 = vsel %vm1432, %v1427, %v1429
  %v1435 = vsel %vm1432, %v1425, %v1427
  %v1436 = vsel %vm1432, %v1431, %v1425
  %vm1437 = vmand %vm1356, %vm1228
  %vm1438 = vmand %vm1437, %vm1230
  %v1439 = vsel %vm1438, 1, 0
  %v1440 = vlaneseq
  %v1441 = vshrl.u32 %v1440, 7
  %v1442 = vsub.s32 0, %v1441
  %v1443 = vrot.slane %v1439, %v1442
  %v1444 = vlaneseq
  %v1445 = vshrl.u32 %v1444, 7
  %v1446 = vsub.s32 1, %v1445
  %v1447 = vrot.slane %v1439, %v1446
  %v1448 = vlaneseq
  %v1449 = vshrl.u32 %v1448, 7
  %v1450 = vsub.s32 2, %v1449
  %v1451 = vrot.slane %v1439, %v1450
  %v1452 = vlaneseq
  %v1453 = vshrl.u32 %v1452, 7
  %v1454 = vsub.s32 3, %v1453
  %v1455 = vrot.slane %v1439, %v1454
  %vm1456 = vcmp.eq.s32.totalorder %v1443, 1
  %vm1457 = vcmp.eq.s32.totalorder %v1447, 1
  %vm1458 = vcmp.eq.s32.totalorder %v1451, 1
  %vm1459 = vcmp.eq.s32.totalorder %v1455, 1
  %v1460 = vsel %vm1456, %v1435, 0.0
  %v1461 = vsel %vm1457, %v1434, 0.0
  %v1462 = vsel %vm1458, %v1433, 0.0
  %v1463 = vsel %vm1459, %v1436, 0.0
  %v1464 = vpack.c.bf16 %v1211, %v1171
  %v1465 = vpack.c.bf16 %v1212, %v1172
  %v1466 = vpack.c.bf16 %v1213, %v1173
  %v1467 = vpack.c.bf16 %v1214, %v1174
  %v1468 = vpack.c.bf16 %v1293, %v1253
  %v1469 = vpack.c.bf16 %v1294, %v1254
  %v1470 = vpack.c.bf16 %v1295, %v1255
  %v1471 = vpack.c.bf16 %v1296, %v1256
  %v1472 = vpack.c.bf16 %v1337, %v1297
  %v1473 = vpack.c.bf16 %v1338, %v1298
  %v1474 = vpack.c.bf16 %v1339, %v1299
  %v1475 = vpack.c.bf16 %v1340, %v1300
  %v1476 = vpack.c.bf16 %v1420, %v1380
  %v1477 = vpack.c.bf16 %v1421, %v1381
  %v1478 = vpack.c.bf16 %v1422, %v1382
  %v1479 = vpack.c.bf16 %v1423, %v1383
  %v1480 = vpack.c.bf16 %v1460, %v1460
  %v1481 = vpack.c.bf16 %v1461, %v1461
  %v1482 = vpack.c.bf16 %v1462, %v1462
  %v1483 = vpack.c.bf16 %v1463, %v1463
  %v1485 = vsel %vm985, %v1129, 0
  %v1488 = vsel %vm454, %v1480, 0
  %v1491 = vsel %vm454, %v1481, 0
  %v1494 = vsel %vm454, %v1482, 0
  %v1497 = vsel %vm454, %v1483, 0
  %1499 = vmatprep.subr.bf16.mxu0 0
  %1500 = vmatpush1.bf16.msra.mxu0 0
  %1501 = vmatprep.subr.bf16.mxu0 0
  %1502 = vmatpush1.bf16.msra.mxu0 0
  %1503 = vmatprep.subr.bf16.mxu0 0
  %1504 = vmatpush1.bf16.msra.mxu0 0
  %1505 = vmatprep.subr.bf16.mxu0 %v1491
  %1506 = vmatpush1.bf16.msra.mxu0 %v1488
  %1507 = vmatprep.subr.bf16.mxu0 %v1477
  %1508 = vmatpush1.bf16.msra.mxu0 %v1476
  %1509 = vmatprep.subr.bf16.mxu0 %v1473
  %1510 = vmatpush1.bf16.msra.mxu0 %v1472
  %1511 = vmatprep.subr.bf16.mxu0 %v1469
  %1512 = vmatpush1.bf16.msra.mxu0 %v1468
  %1513 = vmatprep.subr.bf16.mxu0 %v1465
  %1514 = vmatpush1.bf16.msra.mxu0 %v1464
  %1515 = vmatprep.subr.bf16.mxu0 0
  %1516 = vmatpush2.bf16.msra.mxu0 0
  %1517 = vmatprep.subr.bf16.mxu0 0
  %1518 = vmatpush2.bf16.msra.mxu0 0
  %1519 = vmatprep.subr.bf16.mxu0 0
  %1520 = vmatpush2.bf16.msra.mxu0 0
  %1521 = vmatprep.subr.bf16.mxu0 0
  %1522 = vmatpush2.bf16.msra.mxu0 0
  %1523 = vmatprep.subr.bf16.mxu0 0
  %1524 = vmatpush2.bf16.msra.mxu0 0
  %1525 = vmatprep.subr.bf16.mxu0 0
  %1526 = vmatpush2.bf16.msra.mxu0 0
  %1527 = vmatprep.subr.bf16.mxu0 0
  %1528 = vmatpush2.bf16.msra.mxu0 0
  %1529 = vmatprep.subr.bf16.mxu0 0
  %1530 = vmatpush2.bf16.msra.mxu0 0
  %1531 = vmatprep.mubr.bf16.mxu0 0
  %1532 = vmatmul.mubr.bf16.gmra.mxu0 %v1485
  %v1533 = vpop.f32.mrf.mxu0
  %v1534 = vadd.f32 0.0, %v1533
  %v1535 = vpop.f32.mrf.mxu0
  %v1536 = vadd.f32 0.0, %v1535
  %v1537 = vpop.f32.mrf.mxu0
  %v1538 = vpop.f32.mrf.mxu0
  %1539 = vdwg.mxu0
  %1540 = vmatprep.subr.bf16.mxu0 0
  %1541 = vmatpush1.bf16.msra.mxu0 0
  %1542 = vmatprep.subr.bf16.mxu0 0
  %1543 = vmatpush1.bf16.msra.mxu0 0
  %1544 = vmatprep.subr.bf16.mxu0 0
  %1545 = vmatpush1.bf16.msra.mxu0 0
  %1546 = vmatprep.subr.bf16.mxu0 %v1497
  %1547 = vmatpush1.bf16.msra.mxu0 %v1494
  %1548 = vmatprep.subr.bf16.mxu0 %v1479
  %1549 = vmatpush1.bf16.msra.mxu0 %v1478
  %1550 = vmatprep.subr.bf16.mxu0 %v1475
  %1551 = vmatpush1.bf16.msra.mxu0 %v1474
  %1552 = vmatprep.subr.bf16.mxu0 %v1471
  %1553 = vmatpush1.bf16.msra.mxu0 %v1470
  %1554 = vmatprep.subr.bf16.mxu0 %v1467
  %1555 = vmatpush1.bf16.msra.mxu0 %v1466
  %1556 = vmatprep.subr.bf16.mxu0 0
  %1557 = vmatpush2.bf16.msra.mxu0 0
  %1558 = vmatprep.subr.bf16.mxu0 0
  %1559 = vmatpush2.bf16.msra.mxu0 0
  %1560 = vmatprep.subr.bf16.mxu0 0
  %1561 = vmatpush2.bf16.msra.mxu0 0
  %1562 = vmatprep.subr.bf16.mxu0 0
  %1563 = vmatpush2.bf16.msra.mxu0 0
  %1564 = vmatprep.subr.bf16.mxu0 0
  %1565 = vmatpush2.bf16.msra.mxu0 0
  %1566 = vmatprep.subr.bf16.mxu0 0
  %1567 = vmatpush2.bf16.msra.mxu0 0
  %1568 = vmatprep.subr.bf16.mxu0 0
  %1569 = vmatpush2.bf16.msra.mxu0 0
  %1570 = vmatprep.subr.bf16.mxu0 0
  %1571 = vmatpush2.bf16.msra.mxu0 0
  %1572 = vmatprep.mubr.bf16.mxu0 0
  %1573 = vmatmul.mubr.bf16.gmra.mxu0 %v1485
  %v1574 = vpop.f32.mrf.mxu0
  %v1575 = vadd.f32 0.0, %v1574
  %v1576 = vpop.f32.mrf.mxu0
  %v1577 = vadd.f32 0.0, %v1576
  %v1578 = vpop.f32.mrf.mxu0
  %v1579 = vpop.f32.mrf.mxu0
  %1580 = vdwg.mxu0
  %v1581 = vadd.f32 %v1534, %v1536
  %v1582 = vadd.f32 %v1581, %v1575
  %v1583 = vadd.f32 %v1582, %v1577
  %1584 = vadd.xlane.f32.xlu0 %v1583
  %v1585 = vpop.xlane.xlu0 %1584
  %v1586 = vmul.f32 %v1585, 0.001953125
  %v1587 = vmul.f32 %v1534, %v1534
  %v1588 = vmul.f32 %v1536, %v1536
  %v1589 = vmul.f32 %v1575, %v1575
  %v1590 = vmul.f32 %v1577, %v1577
  %v1591 = vadd.f32 %v1587, %v1588
  %v1592 = vadd.f32 %v1591, %v1589
  %v1593 = vadd.f32 %v1592, %v1590
  %1594 = vadd.xlane.f32.xlu0 %v1593
  %v1595 = vpop.xlane.xlu0 %1594
  %v1596 = vmul.f32 %v1595, 0.001953125
  %v1597 = vmul.f32 %v1586, %v1586
  %v1598 = vsub.f32 %v1596, %v1597
  %v1599 = vmax.f32 %v1598, 0.0
  %v1600 = vadd.f32 %v1599, 1e-05
  %v1601 = vrsqrt.pop %v1600
  %v1602 = vmul.f32 %v601, %v1601
  %v1603 = vmul.f32 %v1586, %v1602
  %v1604 = vsub.f32 %v605, %v1603
  %1606 = vset.pattern.permute.xlu0 2
  %1607 = vperm.xlu0 %1606, %v1602
  %v1608 = vpop.permute.xlu0 %1607
  %v1610 = vmul.f32 %v1534, %v1608
  %v1611 = vmul.f32 %v1536, %v1608
  %v1612 = vmul.f32 %v1575, %v1608
  %v1613 = vmul.f32 %v1577, %v1608
  %1615 = vset.pattern.permute.xlu0 2
  %1616 = vperm.xlu0 %1615, %v1604
  %v1617 = vpop.permute.xlu0 %1616
  %v1619 = vadd.f32 %v1610, %v1617
  %v1620 = vadd.f32 %v1611, %v1617
  %v1621 = vadd.f32 %v1612, %v1617
  %v1622 = vadd.f32 %v1613, %v1617
  %v1623 = vmax.f32 %v1619, 0.0
  %v1624 = vmax.f32 %v1620, 0.0
  %v1625 = vmax.f32 %v1621, 0.0
  %v1626 = vmax.f32 %v1622, 0.0
  %1627 = vst [vmem:[%s8] sm:$0xff] %v1623
  %1628 = vst [vmem:[%s8 + $0x8] sm:$0xff] %v1624
  %1629 = vst [vmem:[%s8 + $0x10] sm:$0xff] %v1625
  %1630 = vst [vmem:[%s8 + $0x18] sm:$0xff] %v1626
  // Predicated region
  $region34: #{widescope_conv2d_block.1} parent=0 // pred_check
    _
  $region35: #{widescope_conv2d_block.1} parent=0 // pred_check_branch
    %1632 = sbr.rel (0) target = $region37
  $region36: #{widescope_conv2d_block.1} parent=0 // pred_region
    _
  $region37: #{widescope_conv2d_block.1} parent=0 // pred_fallthru
    _
  // Predicated region
  $region38: #{widescope_conv2d_block.1} parent=0 // pred_check
    _
  $region39: #{widescope_conv2d_block.1} parent=0 // pred_check_branch
    %1634 = sbr.rel (0) target = $region41
  $region40: #{widescope_conv2d_block.1} parent=0 // pred_region
    _
  $region41: #{widescope_conv2d_block.1} parent=0 // pred_fallthru
    _

</llo_original>
